<compile_context>
chip_gen: v5e
topology: v5e:2x2
jax: 0.10.0
libtpu: 0.0.40
codegen_flags: <defaults>
</compile_context>

<pallas_src>
import functools

import jax
import jax.numpy as jnp
from jax.experimental import pallas as pl
from jax.experimental.pallas import tpu as pltpu

_LANE = 128  # minor-dim padding multiple (vreg lane width)


def _round_up(n, m):
  return ((n + m - 1) // m) * m


def _tpu_info():
  try:
    return pltpu.get_tpu_info()
  except Exception:
    return None


def _vmem_limit_bytes():
  # Generation-aware scoped-VMEM budget: ~3/4 of physical, capped at 100 MiB
  # (v5e/v6e: 128 MiB -> 96 MiB; v7x: 64 MiB -> 48 MiB).  Conservative 48 MiB
  # fallback when the hardware query is unavailable.
  info = _tpu_info()
  cap = getattr(info, "vmem_capacity_bytes", None) if info is not None else None
  if not cap:
    return 48 * 1024 * 1024
  return int(min(cap * 3 // 4, 100 * 1024 * 1024))


def _num_tensorcores():
  info = _tpu_info()
  if info is None:
    return 1
  for name in ("num_cores", "core_count", "num_tensorcores"):
    v = getattr(info, name, None)
    if isinstance(v, int) and v > 0:
      return v
  return 1


def _default_batch_block(bp):
  # Split the batch across the "parallel" grid axis only when the chip has
  # >= 2 TensorCores (v7x) and each half keeps >= 256 rows; otherwise a split
  # just lengthens the sequential grid and reruns the recurrence pipeline.
  half = bp // 2
  if _num_tensorcores() >= 2 and bp % 16 == 0 and half >= 256:
    return half
  return bp


def _rnn_kernel(x_ref, *refs, num_layers, time_chunk, seq_len, masked_tail):
  """One (batch_block, time_chunk) grid step of the fused RNN.

  x_ref          : (Tt, Bb, Ip)  bf16 time-major input chunk (double-buffered)
  refs (inputs)  : wih_0, whh_0, ..., wih_{L-1}, whh_{L-1}
                     wih_l : (in_l, Hp) bf16   (in_0 = Ip, else Hp)
                     whh_l : (Hp, Hp)   bf16
                   b_ref  : (L, 1, Hp)  f32   combined b_ih + b_hh
                   wf_ref : (Hp, Cp)    bf16  fc weight
                   bf_ref : (1, Cp)     f32   fc bias
  refs (output)  : out_ref: (Bb, Cp)    f32   logits (written on last chunk)
  refs (scratch) : h_ref  : (L, Bb, Hp) f32   carried hidden state
                   seq_ref: (Tt, Bb, Hp) bf16 current layer's output sequence
                   pre_ref: (Tt, Bb, Hp) f32  chunk input projections (+bias)
  """
  wih_refs = [refs[2 * l] for l in range(num_layers)]
  whh_refs = [refs[2 * l + 1] for l in range(num_layers)]
  (b_ref, wf_ref, bf_ref, out_ref,
   h_ref, seq_ref, pre_ref) = refs[2 * num_layers:]

  t_idx = pl.program_id(1)
  bb = x_ref.shape[1]
  hp = pre_ref.shape[-1]
  cdt = x_ref.dtype
  unroll = True if time_chunk <= 8 else 2

  @pl.when(t_idx == 0)
  def _init():
    h_ref[...] = jnp.zeros_like(h_ref)

  h_top = None
  for l in range(num_layers):
    # (1) Off-recurrence input projection of the whole chunk, bias folded in:
    #     one (Tt*Bb, in) x (in, Hp) MXU matmul instead of Tt small ones.
    inp = x_ref[...] if l == 0 else seq_ref[...]
    inp2d = inp.reshape(time_chunk * bb, inp.shape[-1])
    proj = jnp.dot(inp2d, wih_refs[l][...],
                   preferred_element_type=jnp.float32) + b_ref[l]
    pre_ref[...] = proj.reshape(time_chunk, bb, hp)

    # (2) Serial recurrence: only the (Bb,Hp)x(Hp,Hp) dot stays on the chain.
    def step(tt, h, l=l):
      pre = pre_ref[tt] + jnp.dot(h.astype(cdt), whh_refs[l][...],
                                  preferred_element_type=jnp.float32)
      h_new = jnp.tanh(pre)
      if masked_tail:
        # Freeze h on zero-padded trailing time steps so the carried state
        # equals the state at the true last step.
        h_new = jnp.where(t_idx * time_chunk + tt < seq_len, h_new, h)
      if l < num_layers - 1:          # becomes the next layer's chunk input
        seq_ref[tt] = h_new.astype(cdt)
      return h_new

    h_top = jax.lax.fori_loop(0, time_chunk, step, h_ref[l], unroll=unroll)
    h_ref[l] = h_top                  # persist across time chunks

  @pl.when(t_idx == pl.num_programs(1) - 1)
  def _finalize():
    out_ref[...] = (jnp.dot(h_top.astype(cdt), wf_ref[...],
                            preferred_element_type=jnp.float32) + bf_ref[...])


def _prepare_inputs(x, params, compute_dtype, time_chunk):
  """Cast/pad/relayout x and params into the kernel layout."""
  B, T, I = x.shape
  L, _, H = params["b"].shape
  C = params["wf"].shape[-1]

  Bp = _round_up(max(B, 8), 8)
  Ip = _round_up(I, _LANE)
  Hp = _round_up(H, _LANE)
  Cp = _round_up(C, _LANE)
  Tp = _round_up(T, time_chunk)

  # Pad + bf16-cast + time-major relayout in one fused XLA pass (the pad/cast
  # already forces this HBM round trip, so the transpose itself is free).
  xp = jnp.pad(x.astype(compute_dtype),
               ((0, Bp - B), (0, Tp - T), (0, Ip - I)))
  x_tm = jnp.transpose(xp, (1, 0, 2))                        # (Tp, Bp, Ip)

  wihs, whhs = [], []
  for l in range(L):
    w_in = params["wih0"] if l == 0 else params["wihr"][l - 1]   # (in_l, H)
    in_pad = (Ip if l == 0 else Hp) - w_in.shape[0]
    wihs.append(
        jnp.pad(w_in, ((0, in_pad), (0, Hp - H))).astype(compute_dtype))
    whhs.append(
        jnp.pad(params["whh"][l],
                ((0, Hp - H), (0, Hp - H))).astype(compute_dtype))

  b = jnp.pad(params["b"], ((0, 0), (0, 0), (0, Hp - H))).astype(jnp.float32)
  wf = jnp.pad(params["wf"], ((0, Hp - H), (0, Cp - C))).astype(compute_dtype)
  bf = jnp.pad(params["bf"], ((0, 0), (0, Cp - C))).astype(jnp.float32)
  return x_tm, wihs, whhs, b, wf, bf, (Bp, Tp, Ip, Hp, Cp)


def rnn_model_forward(x, params, *, compute_dtype=jnp.bfloat16,
                      time_chunk=None, batch_block=None):
  """x: (B, T, I) batch-first (matches PyTorch batch_first=True) -> (B, C)."""
  B, T, _ = x.shape
  L = params["whh"].shape[0]
  C = params["wf"].shape[-1]

  # Time chunk: multiple of 8, capped at 16; T is padded up to a multiple of
  # it (padded steps are masked in-kernel), never falling back to tiny chunks.
  Tt = int(time_chunk) if time_chunk is not None else min(16, _round_up(T, 8))
  Tt = max(1, Tt)

  x_tm, wihs, whhs, b, wf, bf, (Bp, Tp, Ip, Hp, Cp) = _prepare_inputs(
      x, params, compute_dtype, Tt)

  Bb = int(batch_block) if batch_block is not None else _default_batch_block(Bp)
  assert Bp % Bb == 0 and Bb % 8 == 0, "batch block must divide padded batch"
  assert Tp % Tt == 0
  grid = (Bp // Bb, Tp // Tt)   # time axis innermost -> hidden-state carry OK

  kernel = functools.partial(_rnn_kernel, num_layers=L, time_chunk=Tt,
                             seq_len=T, masked_tail=(Tp != T))

  def _resident(a):
    # Grid-invariant operand: one resident VMEM copy, no double buffering.
    zero = (0,) * a.ndim
    return pl.BlockSpec(a.shape, lambda bi, ti: zero,
                        pipeline_mode=pl.Buffered(1))

  weight_args = []
  for l in range(L):
    weight_args += [wihs[l], whhs[l]]
  weight_args += [b, wf, bf]

  in_specs = ([pl.BlockSpec((Tt, Bb, Ip), lambda bi, ti: (ti, bi, 0))]
              + [_resident(a) for a in weight_args])
  out_spec = pl.BlockSpec((Bb, Cp), lambda bi, ti: (bi, 0))

  out_p = pl.pallas_call(
      kernel,
      out_shape=jax.ShapeDtypeStruct((Bp, Cp), jnp.float32),
      grid_spec=pltpu.PrefetchScalarGridSpec(
          num_scalar_prefetch=0,
          grid=grid,
          in_specs=in_specs,
          out_specs=out_spec,
          scratch_shapes=[
              pltpu.VMEM((L, Bb, Hp), jnp.float32),      # carried hidden state
              pltpu.VMEM((Tt, Bb, Hp), compute_dtype),   # layer output sequence
              pltpu.VMEM((Tt, Bb, Hp), jnp.float32),     # chunk input proj.
          ]),
      compiler_params=pltpu.CompilerParams(
          dimension_semantics=("parallel", "arbitrary"),
          vmem_limit_bytes=_vmem_limit_bytes()),
  )(x_tm, *weight_args)

  return out_p[:B, :C]


def init_params(key, input_size, hidden_size, num_layers, num_classes):
  """Deterministic init, mimicking PyTorch's U(-1/sqrt(H), 1/sqrt(H))."""
  ks = jax.random.split(key, 7)
  bound = 1.0 / jnp.sqrt(hidden_size)

  def u(k, shape):
    return jax.random.uniform(k, shape, jnp.float32, -bound, bound)

  wih0 = u(ks[0], (input_size, hidden_size))                          # (I, H)
  n_rest = max(num_layers - 1, 1)
  wihr = u(ks[1], (n_rest, hidden_size, hidden_size))                 # (L-1,H,H)
  whh = u(ks[2], (num_layers, hidden_size, hidden_size))              # (L, H, H)
  b = (u(ks[3], (num_layers, 1, hidden_size))
       + u(ks[4], (num_layers, 1, hidden_size)))                      # b_ih+b_hh
  wf = u(ks[5], (hidden_size, num_classes))                           # (H, C)
  bf = u(ks[6], (1, num_classes))                                     # (1, C)
  return {"wih0": wih0, "wihr": wihr, "whh": whh, "b": b, "wf": wf, "bf": bf}


def reference_forward(x, params, *, num_layers, compute_dtype=jnp.bfloat16):
  """Pure-JAX reference reproducing torch.nn.RNN + Linear semantics, with the
  same bf16-operand / f32-accumulate recipe as the kernel."""
  B, T, _ = x.shape
  H = params["whh"].shape[-1]
  seq = x.astype(compute_dtype)
  for l in range(num_layers):
    w_in = (params["wih0"] if l == 0
            else params["wihr"][l - 1]).astype(compute_dtype)
    w_hh = params["whh"][l].astype(compute_dtype)
    b = params["b"][l]
    h = jnp.zeros((B, H), jnp.float32)
    outs = []
    for t in range(T):
      pre = (jnp.dot(seq[:, t, :], w_in, preferred_element_type=jnp.float32)
             + jnp.dot(h.astype(compute_dtype), w_hh,
                       preferred_element_type=jnp.float32)
             + b)
      h = jnp.tanh(pre)
      outs.append(h.astype(compute_dtype))
    seq = jnp.stack(outs, axis=1)
  return (jnp.dot(seq[:, -1, :], params["wf"].astype(compute_dtype),
                  preferred_element_type=jnp.float32) + params["bf"])


if __name__ == "__main__":
  batch, seq_len, input_size = 2, 8, 16
  hidden_size, num_layers, num_classes = 32, 2, 10

  key = jax.random.PRNGKey(0)
  kx, kp = jax.random.split(key)
  x = jax.random.normal(kx, (batch, seq_len, input_size), jnp.float32)
  params = init_params(kp, input_size, hidden_size, num_layers, num_classes)

  out = rnn_model_forward(x, params)
  out = jax.block_until_ready(out)

  ref = reference_forward(x, params, num_layers=num_layers)
  assert out.shape == (batch, num_classes)
  assert jnp.allclose(out, ref, atol=2e-3, rtol=2e-3), "mismatch vs reference"
  print("KERNEL_OK")
</pallas_src>

<mosaic_0001>
module attributes {stable_mosaic.version = 11 : i64} {
  func.func @_rnn_kernel(%arg0: i32, %arg1: i32, %arg2: memref<8x8x128xbf16, #tpu.memory_space<vmem>>, %arg3: memref<128x128xbf16, #tpu.memory_space<vmem>>, %arg4: memref<128x128xbf16, #tpu.memory_space<vmem>>, %arg5: memref<128x128xbf16, #tpu.memory_space<vmem>>, %arg6: memref<128x128xbf16, #tpu.memory_space<vmem>>, %arg7: memref<2x1x128xf32, #tpu.memory_space<vmem>>, %arg8: memref<128x128xbf16, #tpu.memory_space<vmem>>, %arg9: memref<1x128xf32, #tpu.memory_space<vmem>>, %arg10: memref<8x128xf32, #tpu.memory_space<vmem>>, %arg11: memref<2x8x128xf32, #tpu.memory_space<vmem>>, %arg12: memref<8x8x128xbf16, #tpu.memory_space<vmem>>, %arg13: memref<8x8x128xf32, #tpu.memory_space<vmem>>) attributes {dimension_semantics = [#tpu.dimension_semantics<parallel>, #tpu.dimension_semantics<arbitrary>], iteration_bounds = array<i64: 1, 1>, scalar_prefetch = 0 : i64, scratch_operands = 3 : i64, tpu.core_type = #tpu.core_type<tc>, window_params = [{transform_indices = @transform_0, window_bounds = array<i64: 8, 8, 128>}, {pipeline_mode = #tpu.pipeline_mode<synchronous>, transform_indices = @transform_1, window_bounds = array<i64: 128, 128>}, {pipeline_mode = #tpu.pipeline_mode<synchronous>, transform_indices = @transform_2, window_bounds = array<i64: 128, 128>}, {pipeline_mode = #tpu.pipeline_mode<synchronous>, transform_indices = @transform_3, window_bounds = array<i64: 128, 128>}, {pipeline_mode = #tpu.pipeline_mode<synchronous>, transform_indices = @transform_4, window_bounds = array<i64: 128, 128>}, {pipeline_mode = #tpu.pipeline_mode<synchronous>, transform_indices = @transform_5, window_bounds = array<i64: 2, 1, 128>}, {pipeline_mode = #tpu.pipeline_mode<synchronous>, transform_indices = @transform_6, window_bounds = array<i64: 128, 128>}, {pipeline_mode = #tpu.pipeline_mode<synchronous>, transform_indices = @transform_7, window_bounds = array<i64: 1, 128>}, {transform_indices = @transform_8, window_bounds = array<i64: 8, 128>}]} {
    %c0_i32 = arith.constant 0 : i32
    %0 = arith.cmpi eq, %arg1, %c0_i32 : i32
    %1 = arith.extui %0 : i1 to i32
    %c0_i32_0 = arith.constant 0 : i32
    %2 = arith.cmpi ne, %1, %c0_i32_0 : i32
    scf.if %2 {
      %cst_142 = arith.constant 0.000000e+00 : f32
      %204 = vector.broadcast %cst_142 : f32 to vector<2x8x128xf32>
      %c0_143 = arith.constant 0 : index
      %c0_144 = arith.constant 0 : index
      %c0_145 = arith.constant 0 : index
      %205 = vector.load %arg11[%c0_143, %c0_144, %c0_145] : memref<2x8x128xf32, #tpu.memory_space<vmem>>, vector<2x8x128xf32>
      tpu.vector_store %arg11[%c0_143, %c0_144, %c0_145], %204 {strides = array<i32>} : memref<2x8x128xf32, #tpu.memory_space<vmem>>, vector<2x8x128xf32>,
    } else {
    }
    %c0 = arith.constant 0 : index
    %c0_1 = arith.constant 0 : index
    %c0_2 = arith.constant 0 : index
    %3 = vector.load %arg2[%c0, %c0_1, %c0_2] : memref<8x8x128xbf16, #tpu.memory_space<vmem>>, vector<8x8x128xbf16>
    %4 = vector.shape_cast %3 : vector<8x8x128xbf16> to vector<64x128xbf16>
    %c0_3 = arith.constant 0 : index
    %c0_4 = arith.constant 0 : index
    %5 = vector.load %arg3[%c0_3, %c0_4] : memref<128x128xbf16, #tpu.memory_space<vmem>>, vector<128x128xbf16>
    %cst = arith.constant dense<0.000000e+00> : vector<64x128xf32>
    %6 = tpu.matmul %4, %5, %cst {dimension_numbers = #tpu.dot_dimension_numbers<[1], [0], [0], [1], [0, 0, 1, 1], [], []>} : vector<64x128xbf16>, vector<128x128xbf16>, vector<64x128xf32> -> vector<64x128xf32>
    %c0_5 = arith.constant 0 : index
    %c0_6 = arith.constant 0 : index
    %c0_7 = arith.constant 0 : index
    %7 = vector.load %arg7[%c0_5, %c0_6, %c0_7] : memref<2x1x128xf32, #tpu.memory_space<vmem>>, vector<1x1x128xf32>
    %8 = vector.shape_cast %7 : vector<1x1x128xf32> to vector<1x128xf32>
    %9 = vector.broadcast %8 : vector<1x128xf32> to vector<64x128xf32>
    %10 = arith.addf %6, %9 : vector<64x128xf32>
    %11 = vector.shape_cast %10 : vector<64x128xf32> to vector<8x8x128xf32>
    %c0_8 = arith.constant 0 : index
    %c0_9 = arith.constant 0 : index
    %c0_10 = arith.constant 0 : index
    %12 = vector.load %arg13[%c0_8, %c0_9, %c0_10] : memref<8x8x128xf32, #tpu.memory_space<vmem>>, vector<8x8x128xf32>
    tpu.vector_store %arg13[%c0_8, %c0_9, %c0_10], %11 {strides = array<i32>} : memref<8x8x128xf32, #tpu.memory_space<vmem>>, vector<8x8x128xf32>,
    %c0_11 = arith.constant 0 : index
    %c0_12 = arith.constant 0 : index
    %c0_13 = arith.constant 0 : index
    %13 = vector.load %arg11[%c0_11, %c0_12, %c0_13] : memref<2x8x128xf32, #tpu.memory_space<vmem>>, vector<1x8x128xf32>
    %14 = vector.shape_cast %13 : vector<1x8x128xf32> to vector<8x128xf32>
    %c0_i32_14 = arith.constant 0 : i32
    %15 = arith.index_cast %c0_i32_14 : i32 to index
    %c0_15 = arith.constant 0 : index
    %c0_16 = arith.constant 0 : index
    %16 = vector.load %arg13[%15, %c0_15, %c0_16] : memref<8x8x128xf32, #tpu.memory_space<vmem>>, vector<1x8x128xf32>
    %17 = vector.shape_cast %16 : vector<1x8x128xf32> to vector<8x128xf32>
    %18 = arith.truncf %14 : vector<8x128xf32> to vector<8x128xbf16>
    %c0_17 = arith.constant 0 : index
    %c0_18 = arith.constant 0 : index
    %19 = vector.load %arg4[%c0_17, %c0_18] : memref<128x128xbf16, #tpu.memory_space<vmem>>, vector<128x128xbf16>
    %cst_19 = arith.constant dense<0.000000e+00> : vector<8x128xf32>
    %20 = tpu.matmul %18, %19, %cst_19 {dimension_numbers = #tpu.dot_dimension_numbers<[1], [0], [0], [1], [0, 0, 1, 1], [], []>} : vector<8x128xbf16>, vector<128x128xbf16>, vector<8x128xf32> -> vector<8x128xf32>
    %21 = arith.addf %17, %20 : vector<8x128xf32>
    %22 = math.tanh %21 : vector<8x128xf32>
    %23 = arith.truncf %22 : vector<8x128xf32> to vector<8x128xbf16>
    %24 = arith.index_cast %c0_i32_14 : i32 to index
    %c0_20 = arith.constant 0 : index
    %c0_21 = arith.constant 0 : index
    %25 = vector.load %arg12[%24, %c0_20, %c0_21] : memref<8x8x128xbf16, #tpu.memory_space<vmem>>, vector<1x8x128xbf16>
    %26 = vector.shape_cast %25 : vector<1x8x128xbf16> to vector<8x128xbf16>
    %27 = vector.shape_cast %23 : vector<8x128xbf16> to vector<1x8x128xbf16>
    tpu.vector_store %arg12[%24, %c0_20, %c0_21], %27 {strides = array<i32>} : memref<8x8x128xbf16, #tpu.memory_space<vmem>>, vector<1x8x128xbf16>,
    %c1_i32 = arith.constant 1 : i32
    %28 = arith.index_cast %c1_i32 : i32 to index
    %c0_22 = arith.constant 0 : index
    %c0_23 = arith.constant 0 : index
    %29 = vector.load %arg13[%28, %c0_22, %c0_23] : memref<8x8x128xf32, #tpu.memory_space<vmem>>, vector<1x8x128xf32>
    %30 = vector.shape_cast %29 : vector<1x8x128xf32> to vector<8x128xf32>
    %31 = arith.truncf %22 : vector<8x128xf32> to vector<8x128xbf16>
    %c0_24 = arith.constant 0 : index
    %c0_25 = arith.constant 0 : index
    %32 = vector.load %arg4[%c0_24, %c0_25] : memref<128x128xbf16, #tpu.memory_space<vmem>>, vector<128x128xbf16>
    %cst_26 = arith.constant dense<0.000000e+00> : vector<8x128xf32>
    %33 = tpu.matmul %31, %32, %cst_26 {dimension_numbers = #tpu.dot_dimension_numbers<[1], [0], [0], [1], [0, 0, 1, 1], [], []>} : vector<8x128xbf16>, vector<128x128xbf16>, vector<8x128xf32> -> vector<8x128xf32>
    %34 = arith.addf %30, %33 : vector<8x128xf32>
    %35 = math.tanh %34 : vector<8x128xf32>
    %36 = arith.truncf %35 : vector<8x128xf32> to vector<8x128xbf16>
    %37 = arith.index_cast %c1_i32 : i32 to index
    %c0_27 = arith.constant 0 : index
    %c0_28 = arith.constant 0 : index
    %38 = vector.load %arg12[%37, %c0_27, %c0_28] : memref<8x8x128xbf16, #tpu.memory_space<vmem>>, vector<1x8x128xbf16>
    %39 = vector.shape_cast %38 : vector<1x8x128xbf16> to vector<8x128xbf16>
    %40 = vector.shape_cast %36 : vector<8x128xbf16> to vector<1x8x128xbf16>
    tpu.vector_store %arg12[%37, %c0_27, %c0_28], %40 {strides = array<i32>} : memref<8x8x128xbf16, #tpu.memory_space<vmem>>, vector<1x8x128xbf16>,
    %c2_i32 = arith.constant 2 : i32
    %41 = arith.index_cast %c2_i32 : i32 to index
    %c0_29 = arith.constant 0 : index
    %c0_30 = arith.constant 0 : index
    %42 = vector.load %arg13[%41, %c0_29, %c0_30] : memref<8x8x128xf32, #tpu.memory_space<vmem>>, vector<1x8x128xf32>
    %43 = vector.shape_cast %42 : vector<1x8x128xf32> to vector<8x128xf32>
    %44 = arith.truncf %35 : vector<8x128xf32> to vector<8x128xbf16>
    %c0_31 = arith.constant 0 : index
    %c0_32 = arith.constant 0 : index
    %45 = vector.load %arg4[%c0_31, %c0_32] : memref<128x128xbf16, #tpu.memory_space<vmem>>, vector<128x128xbf16>
    %cst_33 = arith.constant dense<0.000000e+00> : vector<8x128xf32>
    %46 = tpu.matmul %44, %45, %cst_33 {dimension_numbers = #tpu.dot_dimension_numbers<[1], [0], [0], [1], [0, 0, 1, 1], [], []>} : vector<8x128xbf16>, vector<128x128xbf16>, vector<8x128xf32> -> vector<8x128xf32>
    %47 = arith.addf %43, %46 : vector<8x128xf32>
    %48 = math.tanh %47 : vector<8x128xf32>
    %49 = arith.truncf %48 : vector<8x128xf32> to vector<8x128xbf16>
    %50 = arith.index_cast %c2_i32 : i32 to index
    %c0_34 = arith.constant 0 : index
    %c0_35 = arith.constant 0 : index
    %51 = vector.load %arg12[%50, %c0_34, %c0_35] : memref<8x8x128xbf16, #tpu.memory_space<vmem>>, vector<1x8x128xbf16>
    %52 = vector.shape_cast %51 : vector<1x8x128xbf16> to vector<8x128xbf16>
    %53 = vector.shape_cast %49 : vector<8x128xbf16> to vector<1x8x128xbf16>
    tpu.vector_store %arg12[%50, %c0_34, %c0_35], %53 {strides = array<i32>} : memref<8x8x128xbf16, #tpu.memory_space<vmem>>, vector<1x8x128xbf16>,
    %c3_i32 = arith.constant 3 : i32
    %54 = arith.index_cast %c3_i32 : i32 to index
    %c0_36 = arith.constant 0 : index
    %c0_37 = arith.constant 0 : index
    %55 = vector.load %arg13[%54, %c0_36, %c0_37] : memref<8x8x128xf32, #tpu.memory_space<vmem>>, vector<1x8x128xf32>
    %56 = vector.shape_cast %55 : vector<1x8x128xf32> to vector<8x128xf32>
    %57 = arith.truncf %48 : vector<8x128xf32> to vector<8x128xbf16>
    %c0_38 = arith.constant 0 : index
    %c0_39 = arith.constant 0 : index
    %58 = vector.load %arg4[%c0_38, %c0_39] : memref<128x128xbf16, #tpu.memory_space<vmem>>, vector<128x128xbf16>
    %cst_40 = arith.constant dense<0.000000e+00> : vector<8x128xf32>
    %59 = tpu.matmul %57, %58, %cst_40 {dimension_numbers = #tpu.dot_dimension_numbers<[1], [0], [0], [1], [0, 0, 1, 1], [], []>} : vector<8x128xbf16>, vector<128x128xbf16>, vector<8x128xf32> -> vector<8x128xf32>
    %60 = arith.addf %56, %59 : vector<8x128xf32>
    %61 = math.tanh %60 : vector<8x128xf32>
    %62 = arith.truncf %61 : vector<8x128xf32> to vector<8x128xbf16>
    %63 = arith.index_cast %c3_i32 : i32 to index
    %c0_41 = arith.constant 0 : index
    %c0_42 = arith.constant 0 : index
    %64 = vector.load %arg12[%63, %c0_41, %c0_42] : memref<8x8x128xbf16, #tpu.memory_space<vmem>>, vector<1x8x128xbf16>
    %65 = vector.shape_cast %64 : vector<1x8x128xbf16> to vector<8x128xbf16>
    %66 = vector.shape_cast %62 : vector<8x128xbf16> to vector<1x8x128xbf16>
    tpu.vector_store %arg12[%63, %c0_41, %c0_42], %66 {strides = array<i32>} : memref<8x8x128xbf16, #tpu.memory_space<vmem>>, vector<1x8x128xbf16>,
    %c4_i32 = arith.constant 4 : i32
    %67 = arith.index_cast %c4_i32 : i32 to index
    %c0_43 = arith.constant 0 : index
    %c0_44 = arith.constant 0 : index
    %68 = vector.load %arg13[%67, %c0_43, %c0_44] : memref<8x8x128xf32, #tpu.memory_space<vmem>>, vector<1x8x128xf32>
    %69 = vector.shape_cast %68 : vector<1x8x128xf32> to vector<8x128xf32>
    %70 = arith.truncf %61 : vector<8x128xf32> to vector<8x128xbf16>
    %c0_45 = arith.constant 0 : index
    %c0_46 = arith.constant 0 : index
    %71 = vector.load %arg4[%c0_45, %c0_46] : memref<128x128xbf16, #tpu.memory_space<vmem>>, vector<128x128xbf16>
    %cst_47 = arith.constant dense<0.000000e+00> : vector<8x128xf32>
    %72 = tpu.matmul %70, %71, %cst_47 {dimension_numbers = #tpu.dot_dimension_numbers<[1], [0], [0], [1], [0, 0, 1, 1], [], []>} : vector<8x128xbf16>, vector<128x128xbf16>, vector<8x128xf32> -> vector<8x128xf32>
    %73 = arith.addf %69, %72 : vector<8x128xf32>
    %74 = math.tanh %73 : vector<8x128xf32>
    %75 = arith.truncf %74 : vector<8x128xf32> to vector<8x128xbf16>
    %76 = arith.index_cast %c4_i32 : i32 to index
    %c0_48 = arith.constant 0 : index
    %c0_49 = arith.constant 0 : index
    %77 = vector.load %arg12[%76, %c0_48, %c0_49] : memref<8x8x128xbf16, #tpu.memory_space<vmem>>, vector<1x8x128xbf16>
    %78 = vector.shape_cast %77 : vector<1x8x128xbf16> to vector<8x128xbf16>
    %79 = vector.shape_cast %75 : vector<8x128xbf16> to vector<1x8x128xbf16>
    tpu.vector_store %arg12[%76, %c0_48, %c0_49], %79 {strides = array<i32>} : memref<8x8x128xbf16, #tpu.memory_space<vmem>>, vector<1x8x128xbf16>,
    %c5_i32 = arith.constant 5 : i32
    %80 = arith.index_cast %c5_i32 : i32 to index
    %c0_50 = arith.constant 0 : index
    %c0_51 = arith.constant 0 : index
    %81 = vector.load %arg13[%80, %c0_50, %c0_51] : memref<8x8x128xf32, #tpu.memory_space<vmem>>, vector<1x8x128xf32>
    %82 = vector.shape_cast %81 : vector<1x8x128xf32> to vector<8x128xf32>
    %83 = arith.truncf %74 : vector<8x128xf32> to vector<8x128xbf16>
    %c0_52 = arith.constant 0 : index
    %c0_53 = arith.constant 0 : index
    %84 = vector.load %arg4[%c0_52, %c0_53] : memref<128x128xbf16, #tpu.memory_space<vmem>>, vector<128x128xbf16>
    %cst_54 = arith.constant dense<0.000000e+00> : vector<8x128xf32>
    %85 = tpu.matmul %83, %84, %cst_54 {dimension_numbers = #tpu.dot_dimension_numbers<[1], [0], [0], [1], [0, 0, 1, 1], [], []>} : vector<8x128xbf16>, vector<128x128xbf16>, vector<8x128xf32> -> vector<8x128xf32>
    %86 = arith.addf %82, %85 : vector<8x128xf32>
    %87 = math.tanh %86 : vector<8x128xf32>
    %88 = arith.truncf %87 : vector<8x128xf32> to vector<8x128xbf16>
    %89 = arith.index_cast %c5_i32 : i32 to index
    %c0_55 = arith.constant 0 : index
    %c0_56 = arith.constant 0 : index
    %90 = vector.load %arg12[%89, %c0_55, %c0_56] : memref<8x8x128xbf16, #tpu.memory_space<vmem>>, vector<1x8x128xbf16>
    %91 = vector.shape_cast %90 : vector<1x8x128xbf16> to vector<8x128xbf16>
    %92 = vector.shape_cast %88 : vector<8x128xbf16> to vector<1x8x128xbf16>
    tpu.vector_store %arg12[%89, %c0_55, %c0_56], %92 {strides = array<i32>} : memref<8x8x128xbf16, #tpu.memory_space<vmem>>, vector<1x8x128xbf16>,
    %c6_i32 = arith.constant 6 : i32
    %93 = arith.index_cast %c6_i32 : i32 to index
    %c0_57 = arith.constant 0 : index
    %c0_58 = arith.constant 0 : index
    %94 = vector.load %arg13[%93, %c0_57, %c0_58] : memref<8x8x128xf32, #tpu.memory_space<vmem>>, vector<1x8x128xf32>
    %95 = vector.shape_cast %94 : vector<1x8x128xf32> to vector<8x128xf32>
    %96 = arith.truncf %87 : vector<8x128xf32> to vector<8x128xbf16>
    %c0_59 = arith.constant 0 : index
    %c0_60 = arith.constant 0 : index
    %97 = vector.load %arg4[%c0_59, %c0_60] : memref<128x128xbf16, #tpu.memory_space<vmem>>, vector<128x128xbf16>
    %cst_61 = arith.constant dense<0.000000e+00> : vector<8x128xf32>
    %98 = tpu.matmul %96, %97, %cst_61 {dimension_numbers = #tpu.dot_dimension_numbers<[1], [0], [0], [1], [0, 0, 1, 1], [], []>} : vector<8x128xbf16>, vector<128x128xbf16>, vector<8x128xf32> -> vector<8x128xf32>
    %99 = arith.addf %95, %98 : vector<8x128xf32>
    %100 = math.tanh %99 : vector<8x128xf32>
    %101 = arith.truncf %100 : vector<8x128xf32> to vector<8x128xbf16>
    %102 = arith.index_cast %c6_i32 : i32 to index
    %c0_62 = arith.constant 0 : index
    %c0_63 = arith.constant 0 : index
    %103 = vector.load %arg12[%102, %c0_62, %c0_63] : memref<8x8x128xbf16, #tpu.memory_space<vmem>>, vector<1x8x128xbf16>
    %104 = vector.shape_cast %103 : vector<1x8x128xbf16> to vector<8x128xbf16>
    %105 = vector.shape_cast %101 : vector<8x128xbf16> to vector<1x8x128xbf16>
    tpu.vector_store %arg12[%102, %c0_62, %c0_63], %105 {strides = array<i32>} : memref<8x8x128xbf16, #tpu.memory_space<vmem>>, vector<1x8x128xbf16>,
    %c7_i32 = arith.constant 7 : i32
    %106 = arith.index_cast %c7_i32 : i32 to index
    %c0_64 = arith.constant 0 : index
    %c0_65 = arith.constant 0 : index
    %107 = vector.load %arg13[%106, %c0_64, %c0_65] : memref<8x8x128xf32, #tpu.memory_space<vmem>>, vector<1x8x128xf32>
    %108 = vector.shape_cast %107 : vector<1x8x128xf32> to vector<8x128xf32>
    %109 = arith.truncf %100 : vector<8x128xf32> to vector<8x128xbf16>
    %c0_66 = arith.constant 0 : index
    %c0_67 = arith.constant 0 : index
    %110 = vector.load %arg4[%c0_66, %c0_67] : memref<128x128xbf16, #tpu.memory_space<vmem>>, vector<128x128xbf16>
    %cst_68 = arith.constant dense<0.000000e+00> : vector<8x128xf32>
    %111 = tpu.matmul %109, %110, %cst_68 {dimension_numbers = #tpu.dot_dimension_numbers<[1], [0], [0], [1], [0, 0, 1, 1], [], []>} : vector<8x128xbf16>, vector<128x128xbf16>, vector<8x128xf32> -> vector<8x128xf32>
    %112 = arith.addf %108, %111 : vector<8x128xf32>
    %113 = math.tanh %112 : vector<8x128xf32>
    %114 = arith.truncf %113 : vector<8x128xf32> to vector<8x128xbf16>
    %115 = arith.index_cast %c7_i32 : i32 to index
    %c0_69 = arith.constant 0 : index
    %c0_70 = arith.constant 0 : index
    %116 = vector.load %arg12[%115, %c0_69, %c0_70] : memref<8x8x128xbf16, #tpu.memory_space<vmem>>, vector<1x8x128xbf16>
    %117 = vector.shape_cast %116 : vector<1x8x128xbf16> to vector<8x128xbf16>
    %118 = vector.shape_cast %114 : vector<8x128xbf16> to vector<1x8x128xbf16>
    tpu.vector_store %arg12[%115, %c0_69, %c0_70], %118 {strides = array<i32>} : memref<8x8x128xbf16, #tpu.memory_space<vmem>>, vector<1x8x128xbf16>,
    %c8_i32 = arith.constant 8 : i32
    %c0_71 = arith.constant 0 : index
    %c0_72 = arith.constant 0 : index
    %c0_73 = arith.constant 0 : index
    %119 = vector.load %arg11[%c0_71, %c0_72, %c0_73] : memref<2x8x128xf32, #tpu.memory_space<vmem>>, vector<1x8x128xf32>
    %120 = vector.shape_cast %119 : vector<1x8x128xf32> to vector<8x128xf32>
    %121 = vector.shape_cast %113 : vector<8x128xf32> to vector<1x8x128xf32>
    tpu.vector_store %arg11[%c0_71, %c0_72, %c0_73], %121 {strides = array<i32>} : memref<2x8x128xf32, #tpu.memory_space<vmem>>, vector<1x8x128xf32>,
    %c0_74 = arith.constant 0 : index
    %c0_75 = arith.constant 0 : index
    %c0_76 = arith.constant 0 : index
    %122 = vector.load %arg12[%c0_74, %c0_75, %c0_76] : memref<8x8x128xbf16, #tpu.memory_space<vmem>>, vector<8x8x128xbf16>
    %123 = vector.shape_cast %122 : vector<8x8x128xbf16> to vector<64x128xbf16>
    %c0_77 = arith.constant 0 : index
    %c0_78 = arith.constant 0 : index
    %124 = vector.load %arg5[%c0_77, %c0_78] : memref<128x128xbf16, #tpu.memory_space<vmem>>, vector<128x128xbf16>
    %cst_79 = arith.constant dense<0.000000e+00> : vector<64x128xf32>
    %125 = tpu.matmul %123, %124, %cst_79 {dimension_numbers = #tpu.dot_dimension_numbers<[1], [0], [0], [1], [0, 0, 1, 1], [], []>} : vector<64x128xbf16>, vector<128x128xbf16>, vector<64x128xf32> -> vector<64x128xf32>
    %c1 = arith.constant 1 : index
    %c0_80 = arith.constant 0 : index
    %c0_81 = arith.constant 0 : index
    %126 = vector.load %arg7[%c1, %c0_80, %c0_81] : memref<2x1x128xf32, #tpu.memory_space<vmem>>, vector<1x1x128xf32>
    %127 = vector.shape_cast %126 : vector<1x1x128xf32> to vector<1x128xf32>
    %128 = vector.broadcast %127 : vector<1x128xf32> to vector<64x128xf32>
    %129 = arith.addf %125, %128 : vector<64x128xf32>
    %130 = vector.shape_cast %129 : vector<64x128xf32> to vector<8x8x128xf32>
    %c0_82 = arith.constant 0 : index
    %c0_83 = arith.constant 0 : index
    %c0_84 = arith.constant 0 : index
    %131 = vector.load %arg13[%c0_82, %c0_83, %c0_84] : memref<8x8x128xf32, #tpu.memory_space<vmem>>, vector<8x8x128xf32>
    tpu.vector_store %arg13[%c0_82, %c0_83, %c0_84], %130 {strides = array<i32>} : memref<8x8x128xf32, #tpu.memory_space<vmem>>, vector<8x8x128xf32>,
    %c1_85 = arith.constant 1 : index
    %c0_86 = arith.constant 0 : index
    %c0_87 = arith.constant 0 : index
    %132 = vector.load %arg11[%c1_85, %c0_86, %c0_87] : memref<2x8x128xf32, #tpu.memory_space<vmem>>, vector<1x8x128xf32>
    %133 = vector.shape_cast %132 : vector<1x8x128xf32> to vector<8x128xf32>
    %c0_i32_88 = arith.constant 0 : i32
    %134 = arith.index_cast %c0_i32_88 : i32 to index
    %c0_89 = arith.constant 0 : index
    %c0_90 = arith.constant 0 : index
    %135 = vector.load %arg13[%134, %c0_89, %c0_90] : memref<8x8x128xf32, #tpu.memory_space<vmem>>, vector<1x8x128xf32>
    %136 = vector.shape_cast %135 : vector<1x8x128xf32> to vector<8x128xf32>
    %137 = arith.truncf %133 : vector<8x128xf32> to vector<8x128xbf16>
    %c0_91 = arith.constant 0 : index
    %c0_92 = arith.constant 0 : index
    %138 = vector.load %arg6[%c0_91, %c0_92] : memref<128x128xbf16, #tpu.memory_space<vmem>>, vector<128x128xbf16>
    %cst_93 = arith.constant dense<0.000000e+00> : vector<8x128xf32>
    %139 = tpu.matmul %137, %138, %cst_93 {dimension_numbers = #tpu.dot_dimension_numbers<[1], [0], [0], [1], [0, 0, 1, 1], [], []>} : vector<8x128xbf16>, vector<128x128xbf16>, vector<8x128xf32> -> vector<8x128xf32>
    %140 = arith.addf %136, %139 : vector<8x128xf32>
    %141 = math.tanh %140 : vector<8x128xf32>
    %c1_i32_94 = arith.constant 1 : i32
    %142 = arith.index_cast %c1_i32_94 : i32 to index
    %c0_95 = arith.constant 0 : index
    %c0_96 = arith.constant 0 : index
    %143 = vector.load %arg13[%142, %c0_95, %c0_96] : memref<8x8x128xf32, #tpu.memory_space<vmem>>, vector<1x8x128xf32>
    %144 = vector.shape_cast %143 : vector<1x8x128xf32> to vector<8x128xf32>
    %145 = arith.truncf %141 : vector<8x128xf32> to vector<8x128xbf16>
    %c0_97 = arith.constant 0 : index
    %c0_98 = arith.constant 0 : index
    %146 = vector.load %arg6[%c0_97, %c0_98] : memref<128x128xbf16, #tpu.memory_space<vmem>>, vector<128x128xbf16>
    %cst_99 = arith.constant dense<0.000000e+00> : vector<8x128xf32>
    %147 = tpu.matmul %145, %146, %cst_99 {dimension_numbers = #tpu.dot_dimension_numbers<[1], [0], [0], [1], [0, 0, 1, 1], [], []>} : vector<8x128xbf16>, vector<128x128xbf16>, vector<8x128xf32> -> vector<8x128xf32>
    %148 = arith.addf %144, %147 : vector<8x128xf32>
    %149 = math.tanh %148 : vector<8x128xf32>
    %c2_i32_100 = arith.constant 2 : i32
    %150 = arith.index_cast %c2_i32_100 : i32 to index
    %c0_101 = arith.constant 0 : index
    %c0_102 = arith.constant 0 : index
    %151 = vector.load %arg13[%150, %c0_101, %c0_102] : memref<8x8x128xf32, #tpu.memory_space<vmem>>, vector<1x8x128xf32>
    %152 = vector.shape_cast %151 : vector<1x8x128xf32> to vector<8x128xf32>
    %153 = arith.truncf %149 : vector<8x128xf32> to vector<8x128xbf16>
    %c0_103 = arith.constant 0 : index
    %c0_104 = arith.constant 0 : index
    %154 = vector.load %arg6[%c0_103, %c0_104] : memref<128x128xbf16, #tpu.memory_space<vmem>>, vector<128x128xbf16>
    %cst_105 = arith.constant dense<0.000000e+00> : vector<8x128xf32>
    %155 = tpu.matmul %153, %154, %cst_105 {dimension_numbers = #tpu.dot_dimension_numbers<[1], [0], [0], [1], [0, 0, 1, 1], [], []>} : vector<8x128xbf16>, vector<128x128xbf16>, vector<8x128xf32> -> vector<8x128xf32>
    %156 = arith.addf %152, %155 : vector<8x128xf32>
    %157 = math.tanh %156 : vector<8x128xf32>
    %c3_i32_106 = arith.constant 3 : i32
    %158 = arith.index_cast %c3_i32_106 : i32 to index
    %c0_107 = arith.constant 0 : index
    %c0_108 = arith.constant 0 : index
    %159 = vector.load %arg13[%158, %c0_107, %c0_108] : memref<8x8x128xf32, #tpu.memory_space<vmem>>, vector<1x8x128xf32>
    %160 = vector.shape_cast %159 : vector<1x8x128xf32> to vector<8x128xf32>
    %161 = arith.truncf %157 : vector<8x128xf32> to vector<8x128xbf16>
    %c0_109 = arith.constant 0 : index
    %c0_110 = arith.constant 0 : index
    %162 = vector.load %arg6[%c0_109, %c0_110] : memref<128x128xbf16, #tpu.memory_space<vmem>>, vector<128x128xbf16>
    %cst_111 = arith.constant dense<0.000000e+00> : vector<8x128xf32>
    %163 = tpu.matmul %161, %162, %cst_111 {dimension_numbers = #tpu.dot_dimension_numbers<[1], [0], [0], [1], [0, 0, 1, 1], [], []>} : vector<8x128xbf16>, vector<128x128xbf16>, vector<8x128xf32> -> vector<8x128xf32>
    %164 = arith.addf %160, %163 : vector<8x128xf32>
    %165 = math.tanh %164 : vector<8x128xf32>
    %c4_i32_112 = arith.constant 4 : i32
    %166 = arith.index_cast %c4_i32_112 : i32 to index
    %c0_113 = arith.constant 0 : index
    %c0_114 = arith.constant 0 : index
    %167 = vector.load %arg13[%166, %c0_113, %c0_114] : memref<8x8x128xf32, #tpu.memory_space<vmem>>, vector<1x8x128xf32>
    %168 = vector.shape_cast %167 : vector<1x8x128xf32> to vector<8x128xf32>
    %169 = arith.truncf %165 : vector<8x128xf32> to vector<8x128xbf16>
    %c0_115 = arith.constant 0 : index
    %c0_116 = arith.constant 0 : index
    %170 = vector.load %arg6[%c0_115, %c0_116] : memref<128x128xbf16, #tpu.memory_space<vmem>>, vector<128x128xbf16>
    %cst_117 = arith.constant dense<0.000000e+00> : vector<8x128xf32>
    %171 = tpu.matmul %169, %170, %cst_117 {dimension_numbers = #tpu.dot_dimension_numbers<[1], [0], [0], [1], [0, 0, 1, 1], [], []>} : vector<8x128xbf16>, vector<128x128xbf16>, vector<8x128xf32> -> vector<8x128xf32>
    %172 = arith.addf %168, %171 : vector<8x128xf32>
    %173 = math.tanh %172 : vector<8x128xf32>
    %c5_i32_118 = arith.constant 5 : i32
    %174 = arith.index_cast %c5_i32_118 : i32 to index
    %c0_119 = arith.constant 0 : index
    %c0_120 = arith.constant 0 : index
    %175 = vector.load %arg13[%174, %c0_119, %c0_120] : memref<8x8x128xf32, #tpu.memory_space<vmem>>, vector<1x8x128xf32>
    %176 = vector.shape_cast %175 : vector<1x8x128xf32> to vector<8x128xf32>
    %177 = arith.truncf %173 : vector<8x128xf32> to vector<8x128xbf16>
    %c0_121 = arith.constant 0 : index
    %c0_122 = arith.constant 0 : index
    %178 = vector.load %arg6[%c0_121, %c0_122] : memref<128x128xbf16, #tpu.memory_space<vmem>>, vector<128x128xbf16>
    %cst_123 = arith.constant dense<0.000000e+00> : vector<8x128xf32>
    %179 = tpu.matmul %177, %178, %cst_123 {dimension_numbers = #tpu.dot_dimension_numbers<[1], [0], [0], [1], [0, 0, 1, 1], [], []>} : vector<8x128xbf16>, vector<128x128xbf16>, vector<8x128xf32> -> vector<8x128xf32>
    %180 = arith.addf %176, %179 : vector<8x128xf32>
    %181 = math.tanh %180 : vector<8x128xf32>
    %c6_i32_124 = arith.constant 6 : i32
    %182 = arith.index_cast %c6_i32_124 : i32 to index
    %c0_125 = arith.constant 0 : index
    %c0_126 = arith.constant 0 : index
    %183 = vector.load %arg13[%182, %c0_125, %c0_126] : memref<8x8x128xf32, #tpu.memory_space<vmem>>, vector<1x8x128xf32>
    %184 = vector.shape_cast %183 : vector<1x8x128xf32> to vector<8x128xf32>
    %185 = arith.truncf %181 : vector<8x128xf32> to vector<8x128xbf16>
    %c0_127 = arith.constant 0 : index
    %c0_128 = arith.constant 0 : index
    %186 = vector.load %arg6[%c0_127, %c0_128] : memref<128x128xbf16, #tpu.memory_space<vmem>>, vector<128x128xbf16>
    %cst_129 = arith.constant dense<0.000000e+00> : vector<8x128xf32>
    %187 = tpu.matmul %185, %186, %cst_129 {dimension_numbers = #tpu.dot_dimension_numbers<[1], [0], [0], [1], [0, 0, 1, 1], [], []>} : vector<8x128xbf16>, vector<128x128xbf16>, vector<8x128xf32> -> vector<8x128xf32>
    %188 = arith.addf %184, %187 : vector<8x128xf32>
    %189 = math.tanh %188 : vector<8x128xf32>
    %c7_i32_130 = arith.constant 7 : i32
    %190 = arith.index_cast %c7_i32_130 : i32 to index
    %c0_131 = arith.constant 0 : index
    %c0_132 = arith.constant 0 : index
    %191 = vector.load %arg13[%190, %c0_131, %c0_132] : memref<8x8x128xf32, #tpu.memory_space<vmem>>, vector<1x8x128xf32>
    %192 = vector.shape_cast %191 : vector<1x8x128xf32> to vector<8x128xf32>
    %193 = arith.truncf %189 : vector<8x128xf32> to vector<8x128xbf16>
    %c0_133 = arith.constant 0 : index
    %c0_134 = arith.constant 0 : index
    %194 = vector.load %arg6[%c0_133, %c0_134] : memref<128x128xbf16, #tpu.memory_space<vmem>>, vector<128x128xbf16>
    %cst_135 = arith.constant dense<0.000000e+00> : vector<8x128xf32>
    %195 = tpu.matmul %193, %194, %cst_135 {dimension_numbers = #tpu.dot_dimension_numbers<[1], [0], [0], [1], [0, 0, 1, 1], [], []>} : vector<8x128xbf16>, vector<128x128xbf16>, vector<8x128xf32> -> vector<8x128xf32>
    %196 = arith.addf %192, %195 : vector<8x128xf32>
    %197 = math.tanh %196 : vector<8x128xf32>
    %c8_i32_136 = arith.constant 8 : i32
    %c1_137 = arith.constant 1 : index
    %c0_138 = arith.constant 0 : index
    %c0_139 = arith.constant 0 : index
    %198 = vector.load %arg11[%c1_137, %c0_138, %c0_139] : memref<2x8x128xf32, #tpu.memory_space<vmem>>, vector<1x8x128xf32>
    %199 = vector.shape_cast %198 : vector<1x8x128xf32> to vector<8x128xf32>
    %200 = vector.shape_cast %197 : vector<8x128xf32> to vector<1x8x128xf32>
    tpu.vector_store %arg11[%c1_137, %c0_138, %c0_139], %200 {strides = array<i32>} : memref<2x8x128xf32, #tpu.memory_space<vmem>>, vector<1x8x128xf32>,
    %c0_i32_140 = arith.constant 0 : i32
    %201 = arith.cmpi eq, %arg1, %c0_i32_140 : i32
    %202 = arith.extui %201 : i1 to i32
    %c0_i32_141 = arith.constant 0 : i32
    %203 = arith.cmpi ne, %202, %c0_i32_141 : i32
    scf.if %203 {
      %204 = arith.truncf %197 : vector<8x128xf32> to vector<8x128xbf16>
      %c0_142 = arith.constant 0 : index
      %c0_143 = arith.constant 0 : index
      %205 = vector.load %arg8[%c0_142, %c0_143] : memref<128x128xbf16, #tpu.memory_space<vmem>>, vector<128x128xbf16>
      %cst_144 = arith.constant dense<0.000000e+00> : vector<8x128xf32>
      %206 = tpu.matmul %204, %205, %cst_144 {dimension_numbers = #tpu.dot_dimension_numbers<[1], [0], [0], [1], [0, 0, 1, 1], [], []>} : vector<8x128xbf16>, vector<128x128xbf16>, vector<8x128xf32> -> vector<8x128xf32>
      %c0_145 = arith.constant 0 : index
      %c0_146 = arith.constant 0 : index
      %207 = vector.load %arg9[%c0_145, %c0_146] : memref<1x128xf32, #tpu.memory_space<vmem>>, vector<1x128xf32>
      %208 = vector.broadcast %207 : vector<1x128xf32> to vector<8x128xf32>
      %209 = arith.addf %206, %208 : vector<8x128xf32>
      %c0_147 = arith.constant 0 : index
      %c0_148 = arith.constant 0 : index
      %210 = vector.load %arg10[%c0_147, %c0_148] : memref<8x128xf32, #tpu.memory_space<vmem>>, vector<8x128xf32>
      tpu.vector_store %arg10[%c0_147, %c0_148], %209 {strides = array<i32>} : memref<8x128xf32, #tpu.memory_space<vmem>>, vector<8x128xf32>,
    } else {
    }
    return
  }
  func.func @transform_0(%arg0: i32, %arg1: i32) -> (i32, i32, i32) {
    %c0_i32 = arith.constant 0 : i32
    %c0_i32_0 = arith.constant 0 : i32
    return %arg1, %arg0, %c0_i32 : i32, i32, i32
  }
  func.func @transform_1(%arg0: i32, %arg1: i32) -> (i32, i32) {
    %c0_i32 = arith.constant 0 : i32
    %c0_i32_0 = arith.constant 0 : i32
    %c0_i32_1 = arith.constant 0 : i32
    return %c0_i32, %c0_i32_0 : i32, i32
  }
  func.func @transform_2(%arg0: i32, %arg1: i32) -> (i32, i32) {
    %c0_i32 = arith.constant 0 : i32
    %c0_i32_0 = arith.constant 0 : i32
    %c0_i32_1 = arith.constant 0 : i32
    return %c0_i32, %c0_i32_0 : i32, i32
  }
  func.func @transform_3(%arg0: i32, %arg1: i32) -> (i32, i32) {
    %c0_i32 = arith.constant 0 : i32
    %c0_i32_0 = arith.constant 0 : i32
    %c0_i32_1 = arith.constant 0 : i32
    return %c0_i32, %c0_i32_0 : i32, i32
  }
  func.func @transform_4(%arg0: i32, %arg1: i32) -> (i32, i32) {
    %c0_i32 = arith.constant 0 : i32
    %c0_i32_0 = arith.constant 0 : i32
    %c0_i32_1 = arith.constant 0 : i32
    return %c0_i32, %c0_i32_0 : i32, i32
  }
  func.func @transform_5(%arg0: i32, %arg1: i32) -> (i32, i32, i32) {
    %c0_i32 = arith.constant 0 : i32
    %c0_i32_0 = arith.constant 0 : i32
    %c0_i32_1 = arith.constant 0 : i32
    %c0_i32_2 = arith.constant 0 : i32
    return %c0_i32, %c0_i32_0, %c0_i32_1 : i32, i32, i32
  }
  func.func @transform_6(%arg0: i32, %arg1: i32) -> (i32, i32) {
    %c0_i32 = arith.constant 0 : i32
    %c0_i32_0 = arith.constant 0 : i32
    %c0_i32_1 = arith.constant 0 : i32
    return %c0_i32, %c0_i32_0 : i32, i32
  }
  func.func @transform_7(%arg0: i32, %arg1: i32) -> (i32, i32) {
    %c0_i32 = arith.constant 0 : i32
    %c0_i32_0 = arith.constant 0 : i32
    %c0_i32_1 = arith.constant 0 : i32
    return %c0_i32, %c0_i32_0 : i32, i32
  }
  func.func @transform_8(%arg0: i32, %arg1: i32) -> (i32, i32) {
    %c0_i32 = arith.constant 0 : i32
    %c0_i32_0 = arith.constant 0 : i32
    return %arg0, %c0_i32 : i32, i32
  }
}

</mosaic_0001>

<llo_original>
// kernel: tpu_custom_call.1
$region0: #{tpu_custom_call.1}
  #allocation0 [shape = 'u32[]', space=smem, size = 0x4, offset = 0x4, fixed_abs, tag = 'smem constant byte address 0x4 - core index']
  #allocation1 [shape = 'u32[72,128]{1,0:T(1,128)}', space=vmem, size = 0x9000, scoped, tag = 'internal scratch']
  #allocation2 [shape = 'f32[2,8,128]{2,1,0:T(8,128)}', space=vmem, size = 0x2000, scoped, tag = 'scratch operand']
  #allocation3 [shape = 'bf16[8,8,128]{2,1,0:T(8,128)(2,1)}', space=vmem, size = 0x4000, scoped, tag = 'scratch operand']
  #allocation4 [shape = 'f32[8,8,128]{2,1,0:T(8,128)}', space=vmem, size = 0x8000, scoped, tag = 'scratch operand']
  %s0 = inlined_call_operand.hbm [shape: bf16[8,8,128], index: 0, kind: input, shape index: {}]
  %s1 = inlined_call_operand.hbm [shape: bf16[128,128], index: 1, kind: input, shape index: {}]
  %s2 = inlined_call_operand.hbm [shape: bf16[128,128], index: 2, kind: input, shape index: {}]
  %s3 = inlined_call_operand.hbm [shape: bf16[128,128], index: 3, kind: input, shape index: {}]
  %s4 = inlined_call_operand.hbm [shape: bf16[128,128], index: 4, kind: input, shape index: {}]
  %s5 = inlined_call_operand.vmem [shape: f32[2,1,128], index: 5, kind: input, shape index: {}]
  %s6 = inlined_call_operand.hbm [shape: bf16[128,128], index: 6, kind: input, shape index: {}]
  %s7 = inlined_call_operand.vmem [shape: f32[1,128], index: 7, kind: input, shape index: {}]
  %s8 = inlined_call_operand.hbm [shape: f32[8,128], index: 8, kind: output, shape index: {}]
  %s9 = sld [smem:[#allocation0]]
  $region74: #{tpu_custom_call.1} parent=0
    _
  %s11 = ssub.s32 1, %s9
  %s12 = scalar_select 0, %s11, %s9
  $region1: #{tpu_custom_call.1} parent=0
    #allocation5 [shape = 'u8[16384]{0}', space=vmem, size = 0x4000, scoped, tag = 'input window, operand 0, single buffered']
    #allocation6 [shape = 's32[1]{0}', space=sflag, size = 0x4, scoped, tag = 'scoped memory for tpu_custom_call.1']
    #allocation7 [shape = 's32[1]{0}', space=sflag, size = 0x4, scoped, tag = 'scoped memory for tpu_custom_call.1']
    #allocation8 [shape = 'u8[32768]{0}', space=vmem, size = 0x8000, scoped, tag = 'input window, operand 1, single buffered']
    #allocation9 [shape = 's32[1]{0}', space=sflag, size = 0x4, scoped, tag = 'scoped memory for tpu_custom_call.1']
    #allocation10 [shape = 'u8[32768]{0}', space=vmem, size = 0x8000, scoped, tag = 'input window, operand 2, single buffered']
    #allocation11 [shape = 'u8[32768]{0}', space=vmem, size = 0x8000, scoped, tag = 'input window, operand 3, single buffered']
    #allocation12 [shape = 's32[1]{0}', space=sflag, size = 0x4, scoped, tag = 'scoped memory for tpu_custom_call.1']
    #allocation13 [shape = 'u8[32768]{0}', space=vmem, size = 0x8000, scoped, tag = 'input window, operand 4, single buffered']
    #allocation14 [shape = 'u8[32768]{0}', space=vmem, size = 0x8000, scoped, tag = 'input window, operand 6, single buffered']
    #allocation15 [shape = 's32[1]{0}', space=sflag, size = 0x4, scoped, tag = 'scoped memory for tpu_custom_call.1']
    #allocation16 [shape = 'u8[4096]{0}', space=vmem, size = 0x1000, scoped, tag = 'output window, operand 0, single buffered']
    %13 = vsyncpa [#allocation6], 0
    %14 = vsyncpa [#allocation9], 0
    %15 = vsyncpa [#allocation12], 0
    %16 = vsyncpa [#allocation15], 0
    %17 = vsyncpa [#allocation7], 0
    // Predicated region
    $region2: #{tpu_custom_call.1} parent=1 // pred_check
      _
    $region3: #{tpu_custom_call.1} parent=1 // pred_check_branch
      %19 = sbr.rel (0) target = $region5
    $region4: #{tpu_custom_call.1} parent=1 // pred_region
      %21 = vsyncadd [#allocation6], 0
      %s22 = sshll.u32 %s0, 4
      %s23 = int_to_ptr.hbm [resolvable:$true] %s22
      %s24 = sshll.u32 [#allocation5], 4
      %s25 = int_to_ptr.vmem [resolvable:$true] %s24
      %30 = dma.hbm_to_vmem [thread:$0]  %s23, 512, %s25, [#allocation6], 64, 64, 4
    $region5: #{tpu_custom_call.1} parent=1 // pred_fallthru
      _
    // Predicated region
    $region6: #{tpu_custom_call.1} parent=1 // pred_check
      _
    $region7: #{tpu_custom_call.1} parent=1 // pred_check_branch
      %32 = sbr.rel (0) target = $region9
    $region8: #{tpu_custom_call.1} parent=1 // pred_region
      %34 = vsyncadd [#allocation9], 0
      %s35 = sshll.u32 %s1, 4
      %s36 = int_to_ptr.hbm [resolvable:$true] %s35
      %s37 = sshll.u32 [#allocation8], 4
      %s38 = int_to_ptr.vmem [resolvable:$true] %s37
      %43 = dma.hbm_to_vmem [thread:$0]  %s36, 1024, %s38, [#allocation9], 64, 64, 4
    $region9: #{tpu_custom_call.1} parent=1 // pred_fallthru
      _
    // Predicated region
    $region10: #{tpu_custom_call.1} parent=1 // pred_check
      _
    $region11: #{tpu_custom_call.1} parent=1 // pred_check_branch
      %45 = sbr.rel (0) target = $region13
    $region12: #{tpu_custom_call.1} parent=1 // pred_region
      %47 = vsyncadd [#allocation9], 0
      %s48 = sshll.u32 %s2, 4
      %s49 = int_to_ptr.hbm [resolvable:$true] %s48
      %s50 = sshll.u32 [#allocation10], 4
      %s51 = int_to_ptr.vmem [resolvable:$true] %s50
      %56 = dma.hbm_to_vmem [thread:$0]  %s49, 1024, %s51, [#allocation9], 64, 64, 4
    $region13: #{tpu_custom_call.1} parent=1 // pred_fallthru
      _
    // Predicated region
    $region14: #{tpu_custom_call.1} parent=1 // pred_check
      _
    $region15: #{tpu_custom_call.1} parent=1 // pred_check_branch
      %58 = sbr.rel (0) target = $region17
    $region16: #{tpu_custom_call.1} parent=1 // pred_region
      %60 = vsyncadd [#allocation12], 0
      %s61 = sshll.u32 %s3, 4
      %s62 = int_to_ptr.hbm [resolvable:$true] %s61
      %s63 = sshll.u32 [#allocation11], 4
      %s64 = int_to_ptr.vmem [resolvable:$true] %s63
      %69 = dma.hbm_to_vmem [thread:$0]  %s62, 1024, %s64, [#allocation12], 64, 64, 4
    $region17: #{tpu_custom_call.1} parent=1 // pred_fallthru
      _
    // Predicated region
    $region18: #{tpu_custom_call.1} parent=1 // pred_check
      _
    $region19: #{tpu_custom_call.1} parent=1 // pred_check_branch
      %71 = sbr.rel (0) target = $region21
    $region20: #{tpu_custom_call.1} parent=1 // pred_region
      %73 = vsyncadd [#allocation12], 0
      %s74 = sshll.u32 %s4, 4
      %s75 = int_to_ptr.hbm [resolvable:$true] %s74
      %s76 = sshll.u32 [#allocation13], 4
      %s77 = int_to_ptr.vmem [resolvable:$true] %s76
      %82 = dma.hbm_to_vmem [thread:$0]  %s75, 1024, %s77, [#allocation12], 64, 64, 4
    $region21: #{tpu_custom_call.1} parent=1 // pred_fallthru
      _
    // Predicated region
    $region22: #{tpu_custom_call.1} parent=1 // pred_check
      _
    $region23: #{tpu_custom_call.1} parent=1 // pred_check_branch
      %84 = sbr.rel (0) target = $region25
    $region24: #{tpu_custom_call.1} parent=1 // pred_region
      _
    $region25: #{tpu_custom_call.1} parent=1 // pred_fallthru
      _
    // Predicated region
    $region26: #{tpu_custom_call.1} parent=1 // pred_check
      _
    $region27: #{tpu_custom_call.1} parent=1 // pred_check_branch
      %86 = sbr.rel (0) target = $region29
    $region28: #{tpu_custom_call.1} parent=1 // pred_region
      %88 = vsyncadd [#allocation15], 0
      %s89 = sshll.u32 %s6, 4
      %s90 = int_to_ptr.hbm [resolvable:$true] %s89
      %s91 = sshll.u32 [#allocation14], 4
      %s92 = int_to_ptr.vmem [resolvable:$true] %s91
      %97 = dma.hbm_to_vmem [thread:$0]  %s90, 1024, %s92, [#allocation15], 64, 64, 4
    $region29: #{tpu_custom_call.1} parent=1 // pred_fallthru
      _
    // Predicated region
    $region30: #{tpu_custom_call.1} parent=1 // pred_check
      _
    $region31: #{tpu_custom_call.1} parent=1 // pred_check_branch
      %99 = sbr.rel (0) target = $region33
    $region32: #{tpu_custom_call.1} parent=1 // pred_region
      _
    $region33: #{tpu_custom_call.1} parent=1 // pred_fallthru
      _
    // Predicated region
    $region34: #{tpu_custom_call.1} parent=1 // pred_check
      _
    $region35: #{tpu_custom_call.1} parent=1 // pred_check_branch
      %101 = sbr.rel (0) target = $region37
    $region36: #{tpu_custom_call.1} parent=1 // pred_region
      %103 = dma.done [#allocation6], 512
    $region37: #{tpu_custom_call.1} parent=1 // pred_fallthru
      _
    // Predicated region
    $region38: #{tpu_custom_call.1} parent=1 // pred_check
      _
    $region39: #{tpu_custom_call.1} parent=1 // pred_check_branch
      %105 = sbr.rel (0) target = $region41
    $region40: #{tpu_custom_call.1} parent=1 // pred_region
      %107 = dma.done [#allocation9], 1024
    $region41: #{tpu_custom_call.1} parent=1 // pred_fallthru
      _
    // Predicated region
    $region42: #{tpu_custom_call.1} parent=1 // pred_check
      _
    $region43: #{tpu_custom_call.1} parent=1 // pred_check_branch
      %109 = sbr.rel (0) target = $region45
    $region44: #{tpu_custom_call.1} parent=1 // pred_region
      %111 = dma.done [#allocation9], 1024
    $region45: #{tpu_custom_call.1} parent=1 // pred_fallthru
      _
    // Predicated region
    $region46: #{tpu_custom_call.1} parent=1 // pred_check
      _
    $region47: #{tpu_custom_call.1} parent=1 // pred_check_branch
      %113 = sbr.rel (0) target = $region49
    $region48: #{tpu_custom_call.1} parent=1 // pred_region
      %115 = dma.done [#allocation12], 1024
    $region49: #{tpu_custom_call.1} parent=1 // pred_fallthru
      _
    // Predicated region
    $region50: #{tpu_custom_call.1} parent=1 // pred_check
      _
    $region51: #{tpu_custom_call.1} parent=1 // pred_check_branch
      %117 = sbr.rel (0) target = $region53
    $region52: #{tpu_custom_call.1} parent=1 // pred_region
      %119 = dma.done [#allocation12], 1024
    $region53: #{tpu_custom_call.1} parent=1 // pred_fallthru
      _
    // Predicated region
    $region54: #{tpu_custom_call.1} parent=1 // pred_check
      _
    $region55: #{tpu_custom_call.1} parent=1 // pred_check_branch
      %121 = sbr.rel (0) target = $region57
    $region56: #{tpu_custom_call.1} parent=1 // pred_region
      %123 = dma.done [#allocation15], 1024
    $region57: #{tpu_custom_call.1} parent=1 // pred_fallthru
      _
    %p124 = scmp.eq.s32.totalorder 0, 0
    // Predicated region
    $region58: #{tpu_custom_call.1} parent=1 // pred_check
      %p125 = pneg %p124
    $region59: #{tpu_custom_call.1} parent=1 // pred_check_branch
      %127 = sbr.rel (%p125) target = $region61
    $region60: #{tpu_custom_call.1} parent=1 // pred_region
      %128 = vst [vmem:[#allocation2] sm:$0xff] 0.0
      %129 = vst [vmem:[#allocation2 + $0x8] sm:$0xff] 0.0
    $region61: #{tpu_custom_call.1} parent=1 // pred_fallthru
      _
    %v130 = vld [vmem:[#allocation5] sm:$0xf]
    %v131 = vld [vmem:[#allocation5 + $0x4] sm:$0xf]
    %v132 = vld [vmem:[#allocation5 + $0x8] sm:$0xf]
    %v133 = vld [vmem:[#allocation5 + $0xc] sm:$0xf]
    %v134 = vld [vmem:[#allocation5 + $0x10] sm:$0xf]
    %v135 = vld [vmem:[#allocation5 + $0x14] sm:$0xf]
    %v136 = vld [vmem:[#allocation5 + $0x18] sm:$0xf]
    %v137 = vld [vmem:[#allocation5 + $0x1c] sm:$0xf]
    %v138 = vld [vmem:[#allocation8] sm:$0xf]
    %v139 = vld [vmem:[#allocation8 + $0x4] sm:$0xf]
    %v140 = vld [vmem:[#allocation8 + $0x8] sm:$0xf]
    %v141 = vld [vmem:[#allocation8 + $0xc] sm:$0xf]
    %v142 = vld [vmem:[#allocation8 + $0x10] sm:$0xf]
    %v143 = vld [vmem:[#allocation8 + $0x14] sm:$0xf]
    %v144 = vld [vmem:[#allocation8 + $0x18] sm:$0xf]
    %v145 = vld [vmem:[#allocation8 + $0x1c] sm:$0xf]
    %v146 = vld [vmem:[#allocation8 + $0x20] sm:$0xf]
    %v147 = vld [vmem:[#allocation8 + $0x24] sm:$0xf]
    %v148 = vld [vmem:[#allocation8 + $0x28] sm:$0xf]
    %v149 = vld [vmem:[#allocation8 + $0x2c] sm:$0xf]
    %v150 = vld [vmem:[#allocation8 + $0x30] sm:$0xf]
    %v151 = vld [vmem:[#allocation8 + $0x34] sm:$0xf]
    %v152 = vld [vmem:[#allocation8 + $0x38] sm:$0xf]
    %v153 = vld [vmem:[#allocation8 + $0x3c] sm:$0xf]
    %v154 = vld [vmem:[%s5] sm:$0x1]
    %v156 = vperm.slane %v154, 0
    %v166 = vunpack.c.l.b16 %v130
    %v167 = vunpack.c.l.b16 %v131
    %v168 = vunpack.c.l.b16 %v132
    %v169 = vunpack.c.l.b16 %v133
    %v170 = vunpack.c.l.b16 %v134
    %v171 = vunpack.c.l.b16 %v135
    %v172 = vunpack.c.l.b16 %v136
    %v173 = vunpack.c.l.b16 %v137
    %v174 = vpack.c.b16 %v167, %v166
    %v175 = vpack.c.b16 %v169, %v168
    %v176 = vpack.c.b16 %v171, %v170
    %v177 = vpack.c.b16 %v173, %v172
    %v198 = vunpack.c.l.b16 %v138
    %v199 = vunpack.c.l.b16 %v139
    %v200 = vunpack.c.l.b16 %v140
    %v201 = vunpack.c.l.b16 %v141
    %v202 = vunpack.c.l.b16 %v142
    %v203 = vunpack.c.l.b16 %v143
    %v204 = vunpack.c.l.b16 %v144
    %v205 = vunpack.c.l.b16 %v145
    %v206 = vunpack.c.l.b16 %v146
    %v207 = vunpack.c.l.b16 %v147
    %v208 = vunpack.c.l.b16 %v148
    %v209 = vunpack.c.l.b16 %v149
    %v210 = vunpack.c.l.b16 %v150
    %v211 = vunpack.c.l.b16 %v151
    %v212 = vunpack.c.l.b16 %v152
    %v213 = vunpack.c.l.b16 %v153
    %v214 = vpack.c.b16 %v199, %v198
    %v215 = vpack.c.b16 %v201, %v200
    %v216 = vpack.c.b16 %v203, %v202
    %v217 = vpack.c.b16 %v205, %v204
    %v218 = vpack.c.b16 %v207, %v206
    %v219 = vpack.c.b16 %v209, %v208
    %v220 = vpack.c.b16 %v211, %v210
    %v221 = vpack.c.b16 %v213, %v212
    %230 = vmatpush.bf16.msra.mxu0 %v221
    %231 = vmatpush.bf16.msra.mxu0 %v220
    %232 = vmatpush.bf16.msra.mxu0 %v219
    %233 = vmatpush.bf16.msra.mxu0 %v218
    %234 = vmatpush.bf16.msra.mxu0 %v217
    %235 = vmatpush.bf16.msra.mxu0 %v216
    %236 = vmatpush.bf16.msra.mxu0 %v215
    %237 = vmatpush.bf16.msra.mxu0 %v214
    %238 = vmatmul.bf16.gmra.mxu0 %v174
    %v239 = vpop.f32.mrf.mxu0
    %v240 = vadd.f32 %v156, %v239
    %v241 = vpop.f32.mrf.mxu0
    %v242 = vadd.f32 %v156, %v241
    %243 = vmatmul.bf16.gmra.mxu0 %v175
    %v244 = vpop.f32.mrf.mxu0
    %v245 = vadd.f32 %v156, %v244
    %v246 = vpop.f32.mrf.mxu0
    %v247 = vadd.f32 %v156, %v246
    %248 = vmatmul.bf16.gmra.mxu0 %v176
    %v249 = vpop.f32.mrf.mxu0
    %v250 = vadd.f32 %v156, %v249
    %v251 = vpop.f32.mrf.mxu0
    %v252 = vadd.f32 %v156, %v251
    %253 = vmatmul.bf16.gmra.mxu0 %v177
    %v254 = vpop.f32.mrf.mxu0
    %v255 = vadd.f32 %v156, %v254
    %v256 = vpop.f32.mrf.mxu0
    %v257 = vadd.f32 %v156, %v256
    %258 = vdwg.mxu0
    %259 = vst [vmem:[#allocation4] sm:$0xff] %v240
    %260 = vst [vmem:[#allocation4 + $0x8] sm:$0xff] %v242
    %261 = vst [vmem:[#allocation4 + $0x10] sm:$0xff] %v245
    %262 = vst [vmem:[#allocation4 + $0x18] sm:$0xff] %v247
    %263 = vst [vmem:[#allocation4 + $0x20] sm:$0xff] %v250
    %264 = vst [vmem:[#allocation4 + $0x28] sm:$0xff] %v252
    %265 = vst [vmem:[#allocation4 + $0x30] sm:$0xff] %v255
    %266 = vst [vmem:[#allocation4 + $0x38] sm:$0xff] %v257
    %v267 = vld [vmem:[#allocation2] sm:$0xff]
    %v268 = vld [vmem:[#allocation4] sm:$0xff]
    %v269 = vpack.c.bf16 %v267, %v267
    %v270 = vld [vmem:[#allocation10] sm:$0xf]
    %v271 = vld [vmem:[#allocation10 + $0x4] sm:$0xf]
    %v272 = vld [vmem:[#allocation10 + $0x8] sm:$0xf]
    %v273 = vld [vmem:[#allocation10 + $0xc] sm:$0xf]
    %v274 = vld [vmem:[#allocation10 + $0x10] sm:$0xf]
    %v275 = vld [vmem:[#allocation10 + $0x14] sm:$0xf]
    %v276 = vld [vmem:[#allocation10 + $0x18] sm:$0xf]
    %v277 = vld [vmem:[#allocation10 + $0x1c] sm:$0xf]
    %v278 = vld [vmem:[#allocation10 + $0x20] sm:$0xf]
    %v279 = vld [vmem:[#allocation10 + $0x24] sm:$0xf]
    %v280 = vld [vmem:[#allocation10 + $0x28] sm:$0xf]
    %v281 = vld [vmem:[#allocation10 + $0x2c] sm:$0xf]
    %v282 = vld [vmem:[#allocation10 + $0x30] sm:$0xf]
    %v283 = vld [vmem:[#allocation10 + $0x34] sm:$0xf]
    %v284 = vld [vmem:[#allocation10 + $0x38] sm:$0xf]
    %v285 = vld [vmem:[#allocation10 + $0x3c] sm:$0xf]
    %v302 = vunpack.c.l.b16 %v270
    %v303 = vunpack.c.l.b16 %v271
    %v304 = vunpack.c.l.b16 %v272
    %v305 = vunpack.c.l.b16 %v273
    %v306 = vunpack.c.l.b16 %v274
    %v307 = vunpack.c.l.b16 %v275
    %v308 = vunpack.c.l.b16 %v276
    %v309 = vunpack.c.l.b16 %v277
    %v310 = vunpack.c.l.b16 %v278
    %v311 = vunpack.c.l.b16 %v279
    %v312 = vunpack.c.l.b16 %v280
    %v313 = vunpack.c.l.b16 %v281
    %v314 = vunpack.c.l.b16 %v282
    %v315 = vunpack.c.l.b16 %v283
    %v316 = vunpack.c.l.b16 %v284
    %v317 = vunpack.c.l.b16 %v285
    %v318 = vpack.c.b16 %v303, %v302
    %v319 = vpack.c.b16 %v305, %v304
    %v320 = vpack.c.b16 %v307, %v306
    %v321 = vpack.c.b16 %v309, %v308
    %v322 = vpack.c.b16 %v311, %v310
    %v323 = vpack.c.b16 %v313, %v312
    %v324 = vpack.c.b16 %v315, %v314
    %v325 = vpack.c.b16 %v317, %v316
    %334 = vmatpush.bf16.msra.mxu0 %v325
    %335 = vmatpush.bf16.msra.mxu0 %v324
    %336 = vmatpush.bf16.msra.mxu0 %v323
    %337 = vmatpush.bf16.msra.mxu0 %v322
    %338 = vmatpush.bf16.msra.mxu0 %v321
    %339 = vmatpush.bf16.msra.mxu0 %v320
    %340 = vmatpush.bf16.msra.mxu0 %v319
    %341 = vmatpush.bf16.msra.mxu0 %v318
    %342 = vmatmul.bf16.gmra.mxu0 %v269
    %v343 = vpop.f32.mrf.mxu0
    %v344 = vadd.f32 0.0, %v343
    %v345 = vpop.f32.mrf.mxu0
    %346 = vdwg.mxu0
    %v347 = vadd.f32 %v268, %v344
    %v348 = vtanh.pop %v347
    %v349 = vpack.c.bf16 %v348, %v348
    %350 = vst [vmem:[#allocation3] sm:$0xf] %v349
    %s351 = scalar_lea.vmem [#allocation4], 8
    %v352 = vld [vmem:[%s351] sm:$0xff]
    %v353 = vld [vmem:[#allocation10] sm:$0xf]
    %v354 = vld [vmem:[#allocation10 + $0x4] sm:$0xf]
    %v355 = vld [vmem:[#allocation10 + $0x8] sm:$0xf]
    %v356 = vld [vmem:[#allocation10 + $0xc] sm:$0xf]
    %v357 = vld [vmem:[#allocation10 + $0x10] sm:$0xf]
    %v358 = vld [vmem:[#allocation10 + $0x14] sm:$0xf]
    %v359 = vld [vmem:[#allocation10 + $0x18] sm:$0xf]
    %v360 = vld [vmem:[#allocation10 + $0x1c] sm:$0xf]
    %v361 = vld [vmem:[#allocation10 + $0x20] sm:$0xf]
    %v362 = vld [vmem:[#allocation10 + $0x24] sm:$0xf]
    %v363 = vld [vmem:[#allocation10 + $0x28] sm:$0xf]
    %v364 = vld [vmem:[#allocation10 + $0x2c] sm:$0xf]
    %v365 = vld [vmem:[#allocation10 + $0x30] sm:$0xf]
    %v366 = vld [vmem:[#allocation10 + $0x34] sm:$0xf]
    %v367 = vld [vmem:[#allocation10 + $0x38] sm:$0xf]
    %v368 = vld [vmem:[#allocation10 + $0x3c] sm:$0xf]
    %v385 = vunpack.c.l.b16 %v353
    %v386 = vunpack.c.l.b16 %v354
    %v387 = vunpack.c.l.b16 %v355
    %v388 = vunpack.c.l.b16 %v356
    %v389 = vunpack.c.l.b16 %v357
    %v390 = vunpack.c.l.b16 %v358
    %v391 = vunpack.c.l.b16 %v359
    %v392 = vunpack.c.l.b16 %v360
    %v393 = vunpack.c.l.b16 %v361
    %v394 = vunpack.c.l.b16 %v362
    %v395 = vunpack.c.l.b16 %v363
    %v396 = vunpack.c.l.b16 %v364
    %v397 = vunpack.c.l.b16 %v365
    %v398 = vunpack.c.l.b16 %v366
    %v399 = vunpack.c.l.b16 %v367
    %v400 = vunpack.c.l.b16 %v368
    %v401 = vpack.c.b16 %v386, %v385
    %v402 = vpack.c.b16 %v388, %v387
    %v403 = vpack.c.b16 %v390, %v389
    %v404 = vpack.c.b16 %v392, %v391
    %v405 = vpack.c.b16 %v394, %v393
    %v406 = vpack.c.b16 %v396, %v395
    %v407 = vpack.c.b16 %v398, %v397
    %v408 = vpack.c.b16 %v400, %v399
    %417 = vmatpush.bf16.msra.mxu0 %v408
    %418 = vmatpush.bf16.msra.mxu0 %v407
    %419 = vmatpush.bf16.msra.mxu0 %v406
    %420 = vmatpush.bf16.msra.mxu0 %v405
    %421 = vmatpush.bf16.msra.mxu0 %v404
    %422 = vmatpush.bf16.msra.mxu0 %v403
    %423 = vmatpush.bf16.msra.mxu0 %v402
    %424 = vmatpush.bf16.msra.mxu0 %v401
    %425 = vmatmul.bf16.gmra.mxu0 %v349
    %v426 = vpop.f32.mrf.mxu0
    %v427 = vadd.f32 0.0, %v426
    %v428 = vpop.f32.mrf.mxu0
    %429 = vdwg.mxu0
    %v430 = vadd.f32 %v352, %v427
    %v431 = vtanh.pop %v430
    %v432 = vpack.c.bf16 %v431, %v431
    %s433 = scalar_lea.vmem [#allocation3], 4
    %434 = vst [vmem:[%s433] sm:$0xf] %v432
    %s435 = scalar_lea.vmem [#allocation4], 16
    %v436 = vld [vmem:[%s435] sm:$0xff]
    %v437 = vld [vmem:[#allocation10] sm:$0xf]
    %v438 = vld [vmem:[#allocation10 + $0x4] sm:$0xf]
    %v439 = vld [vmem:[#allocation10 + $0x8] sm:$0xf]
    %v440 = vld [vmem:[#allocation10 + $0xc] sm:$0xf]
    %v441 = vld [vmem:[#allocation10 + $0x10] sm:$0xf]
    %v442 = vld [vmem:[#allocation10 + $0x14] sm:$0xf]
    %v443 = vld [vmem:[#allocation10 + $0x18] sm:$0xf]
    %v444 = vld [vmem:[#allocation10 + $0x1c] sm:$0xf]
    %v445 = vld [vmem:[#allocation10 + $0x20] sm:$0xf]
    %v446 = vld [vmem:[#allocation10 + $0x24] sm:$0xf]
    %v447 = vld [vmem:[#allocation10 + $0x28] sm:$0xf]
    %v448 = vld [vmem:[#allocation10 + $0x2c] sm:$0xf]
    %v449 = vld [vmem:[#allocation10 + $0x30] sm:$0xf]
    %v450 = vld [vmem:[#allocation10 + $0x34] sm:$0xf]
    %v451 = vld [vmem:[#allocation10 + $0x38] sm:$0xf]
    %v452 = vld [vmem:[#allocation10 + $0x3c] sm:$0xf]
    %v469 = vunpack.c.l.b16 %v437
    %v470 = vunpack.c.l.b16 %v438
    %v471 = vunpack.c.l.b16 %v439
    %v472 = vunpack.c.l.b16 %v440
    %v473 = vunpack.c.l.b16 %v441
    %v474 = vunpack.c.l.b16 %v442
    %v475 = vunpack.c.l.b16 %v443
    %v476 = vunpack.c.l.b16 %v444
    %v477 = vunpack.c.l.b16 %v445
    %v478 = vunpack.c.l.b16 %v446
    %v479 = vunpack.c.l.b16 %v447
    %v480 = vunpack.c.l.b16 %v448
    %v481 = vunpack.c.l.b16 %v449
    %v482 = vunpack.c.l.b16 %v450
    %v483 = vunpack.c.l.b16 %v451
    %v484 = vunpack.c.l.b16 %v452
    %v485 = vpack.c.b16 %v470, %v469
    %v486 = vpack.c.b16 %v472, %v471
    %v487 = vpack.c.b16 %v474, %v473
    %v488 = vpack.c.b16 %v476, %v475
    %v489 = vpack.c.b16 %v478, %v477
    %v490 = vpack.c.b16 %v480, %v479
    %v491 = vpack.c.b16 %v482, %v481
    %v492 = vpack.c.b16 %v484, %v483
    %501 = vmatpush.bf16.msra.mxu0 %v492
    %502 = vmatpush.bf16.msra.mxu0 %v491
    %503 = vmatpush.bf16.msra.mxu0 %v490
    %504 = vmatpush.bf16.msra.mxu0 %v489
    %505 = vmatpush.bf16.msra.mxu0 %v488
    %506 = vmatpush.bf16.msra.mxu0 %v487
    %507 = vmatpush.bf16.msra.mxu0 %v486
    %508 = vmatpush.bf16.msra.mxu0 %v485
    %509 = vmatmul.bf16.gmra.mxu0 %v432
    %v510 = vpop.f32.mrf.mxu0
    %v511 = vadd.f32 0.0, %v510
    %v512 = vpop.f32.mrf.mxu0
    %513 = vdwg.mxu0
    %v514 = vadd.f32 %v436, %v511
    %v515 = vtanh.pop %v514
    %v516 = vpack.c.bf16 %v515, %v515
    %s517 = scalar_lea.vmem [#allocation3], 8
    %518 = vst [vmem:[%s517] sm:$0xf] %v516
    %s519 = scalar_lea.vmem [#allocation4], 24
    %v520 = vld [vmem:[%s519] sm:$0xff]
    %v521 = vld [vmem:[#allocation10] sm:$0xf]
    %v522 = vld [vmem:[#allocation10 + $0x4] sm:$0xf]
    %v523 = vld [vmem:[#allocation10 + $0x8] sm:$0xf]
    %v524 = vld [vmem:[#allocation10 + $0xc] sm:$0xf]
    %v525 = vld [vmem:[#allocation10 + $0x10] sm:$0xf]
    %v526 = vld [vmem:[#allocation10 + $0x14] sm:$0xf]
    %v527 = vld [vmem:[#allocation10 + $0x18] sm:$0xf]
    %v528 = vld [vmem:[#allocation10 + $0x1c] sm:$0xf]
    %v529 = vld [vmem:[#allocation10 + $0x20] sm:$0xf]
    %v530 = vld [vmem:[#allocation10 + $0x24] sm:$0xf]
    %v531 = vld [vmem:[#allocation10 + $0x28] sm:$0xf]
    %v532 = vld [vmem:[#allocation10 + $0x2c] sm:$0xf]
    %v533 = vld [vmem:[#allocation10 + $0x30] sm:$0xf]
    %v534 = vld [vmem:[#allocation10 + $0x34] sm:$0xf]
    %v535 = vld [vmem:[#allocation10 + $0x38] sm:$0xf]
    %v536 = vld [vmem:[#allocation10 + $0x3c] sm:$0xf]
    %v553 = vunpack.c.l.b16 %v521
    %v554 = vunpack.c.l.b16 %v522
    %v555 = vunpack.c.l.b16 %v523
    %v556 = vunpack.c.l.b16 %v524
    %v557 = vunpack.c.l.b16 %v525
    %v558 = vunpack.c.l.b16 %v526
    %v559 = vunpack.c.l.b16 %v527
    %v560 = vunpack.c.l.b16 %v528
    %v561 = vunpack.c.l.b16 %v529
    %v562 = vunpack.c.l.b16 %v530
    %v563 = vunpack.c.l.b16 %v531
    %v564 = vunpack.c.l.b16 %v532
    %v565 = vunpack.c.l.b16 %v533
    %v566 = vunpack.c.l.b16 %v534
    %v567 = vunpack.c.l.b16 %v535
    %v568 = vunpack.c.l.b16 %v536
    %v569 = vpack.c.b16 %v554, %v553
    %v570 = vpack.c.b16 %v556, %v555
    %v571 = vpack.c.b16 %v558, %v557
    %v572 = vpack.c.b16 %v560, %v559
    %v573 = vpack.c.b16 %v562, %v561
    %v574 = vpack.c.b16 %v564, %v563
    %v575 = vpack.c.b16 %v566, %v565
    %v576 = vpack.c.b16 %v568, %v567
    %585 = vmatpush.bf16.msra.mxu0 %v576
    %586 = vmatpush.bf16.msra.mxu0 %v575
    %587 = vmatpush.bf16.msra.mxu0 %v574
    %588 = vmatpush.bf16.msra.mxu0 %v573
    %589 = vmatpush.bf16.msra.mxu0 %v572
    %590 = vmatpush.bf16.msra.mxu0 %v571
    %591 = vmatpush.bf16.msra.mxu0 %v570
    %592 = vmatpush.bf16.msra.mxu0 %v569
    %593 = vmatmul.bf16.gmra.mxu0 %v516
    %v594 = vpop.f32.mrf.mxu0
    %v595 = vadd.f32 0.0, %v594
    %v596 = vpop.f32.mrf.mxu0
    %597 = vdwg.mxu0
    %v598 = vadd.f32 %v520, %v595
    %v599 = vtanh.pop %v598
    %v600 = vpack.c.bf16 %v599, %v599
    %s601 = scalar_lea.vmem [#allocation3], 12
    %602 = vst [vmem:[%s601] sm:$0xf] %v600
    %s603 = scalar_lea.vmem [#allocation4], 32
    %v604 = vld [vmem:[%s603] sm:$0xff]
    %v605 = vld [vmem:[#allocation10] sm:$0xf]
    %v606 = vld [vmem:[#allocation10 + $0x4] sm:$0xf]
    %v607 = vld [vmem:[#allocation10 + $0x8] sm:$0xf]
    %v608 = vld [vmem:[#allocation10 + $0xc] sm:$0xf]
    %v609 = vld [vmem:[#allocation10 + $0x10] sm:$0xf]
    %v610 = vld [vmem:[#allocation10 + $0x14] sm:$0xf]
    %v611 = vld [vmem:[#allocation10 + $0x18] sm:$0xf]
    %v612 = vld [vmem:[#allocation10 + $0x1c] sm:$0xf]
    %v613 = vld [vmem:[#allocation10 + $0x20] sm:$0xf]
    %v614 = vld [vmem:[#allocation10 + $0x24] sm:$0xf]
    %v615 = vld [vmem:[#allocation10 + $0x28] sm:$0xf]
    %v616 = vld [vmem:[#allocation10 + $0x2c] sm:$0xf]
    %v617 = vld [vmem:[#allocation10 + $0x30] sm:$0xf]
    %v618 = vld [vmem:[#allocation10 + $0x34] sm:$0xf]
    %v619 = vld [vmem:[#allocation10 + $0x38] sm:$0xf]
    %v620 = vld [vmem:[#allocation10 + $0x3c] sm:$0xf]
    %v637 = vunpack.c.l.b16 %v605
    %v638 = vunpack.c.l.b16 %v606
    %v639 = vunpack.c.l.b16 %v607
    %v640 = vunpack.c.l.b16 %v608
    %v641 = vunpack.c.l.b16 %v609
    %v642 = vunpack.c.l.b16 %v610
    %v643 = vunpack.c.l.b16 %v611
    %v644 = vunpack.c.l.b16 %v612
    %v645 = vunpack.c.l.b16 %v613
    %v646 = vunpack.c.l.b16 %v614
    %v647 = vunpack.c.l.b16 %v615
    %v648 = vunpack.c.l.b16 %v616
    %v649 = vunpack.c.l.b16 %v617
    %v650 = vunpack.c.l.b16 %v618
    %v651 = vunpack.c.l.b16 %v619
    %v652 = vunpack.c.l.b16 %v620
    %v653 = vpack.c.b16 %v638, %v637
    %v654 = vpack.c.b16 %v640, %v639
    %v655 = vpack.c.b16 %v642, %v641
    %v656 = vpack.c.b16 %v644, %v643
    %v657 = vpack.c.b16 %v646, %v645
    %v658 = vpack.c.b16 %v648, %v647
    %v659 = vpack.c.b16 %v650, %v649
    %v660 = vpack.c.b16 %v652, %v651
    %669 = vmatpush.bf16.msra.mxu0 %v660
    %670 = vmatpush.bf16.msra.mxu0 %v659
    %671 = vmatpush.bf16.msra.mxu0 %v658
    %672 = vmatpush.bf16.msra.mxu0 %v657
    %673 = vmatpush.bf16.msra.mxu0 %v656
    %674 = vmatpush.bf16.msra.mxu0 %v655
    %675 = vmatpush.bf16.msra.mxu0 %v654
    %676 = vmatpush.bf16.msra.mxu0 %v653
    %677 = vmatmul.bf16.gmra.mxu0 %v600
    %v678 = vpop.f32.mrf.mxu0
    %v679 = vadd.f32 0.0, %v678
    %v680 = vpop.f32.mrf.mxu0
    %681 = vdwg.mxu0
    %v682 = vadd.f32 %v604, %v679
    %v683 = vtanh.pop %v682
    %v684 = vpack.c.bf16 %v683, %v683
    %s685 = scalar_lea.vmem [#allocation3], 16
    %686 = vst [vmem:[%s685] sm:$0xf] %v684
    %s687 = scalar_lea.vmem [#allocation4], 40
    %v688 = vld [vmem:[%s687] sm:$0xff]
    %v689 = vld [vmem:[#allocation10] sm:$0xf]
    %v690 = vld [vmem:[#allocation10 + $0x4] sm:$0xf]
    %v691 = vld [vmem:[#allocation10 + $0x8] sm:$0xf]
    %v692 = vld [vmem:[#allocation10 + $0xc] sm:$0xf]
    %v693 = vld [vmem:[#allocation10 + $0x10] sm:$0xf]
    %v694 = vld [vmem:[#allocation10 + $0x14] sm:$0xf]
    %v695 = vld [vmem:[#allocation10 + $0x18] sm:$0xf]
    %v696 = vld [vmem:[#allocation10 + $0x1c] sm:$0xf]
    %v697 = vld [vmem:[#allocation10 + $0x20] sm:$0xf]
    %v698 = vld [vmem:[#allocation10 + $0x24] sm:$0xf]
    %v699 = vld [vmem:[#allocation10 + $0x28] sm:$0xf]
    %v700 = vld [vmem:[#allocation10 + $0x2c] sm:$0xf]
    %v701 = vld [vmem:[#allocation10 + $0x30] sm:$0xf]
    %v702 = vld [vmem:[#allocation10 + $0x34] sm:$0xf]
    %v703 = vld [vmem:[#allocation10 + $0x38] sm:$0xf]
    %v704 = vld [vmem:[#allocation10 + $0x3c] sm:$0xf]
    %v721 = vunpack.c.l.b16 %v689
    %v722 = vunpack.c.l.b16 %v690
    %v723 = vunpack.c.l.b16 %v691
    %v724 = vunpack.c.l.b16 %v692
    %v725 = vunpack.c.l.b16 %v693
    %v726 = vunpack.c.l.b16 %v694
    %v727 = vunpack.c.l.b16 %v695
    %v728 = vunpack.c.l.b16 %v696
    %v729 = vunpack.c.l.b16 %v697
    %v730 = vunpack.c.l.b16 %v698
    %v731 = vunpack.c.l.b16 %v699
    %v732 = vunpack.c.l.b16 %v700
    %v733 = vunpack.c.l.b16 %v701
    %v734 = vunpack.c.l.b16 %v702
    %v735 = vunpack.c.l.b16 %v703
    %v736 = vunpack.c.l.b16 %v704
    %v737 = vpack.c.b16 %v722, %v721
    %v738 = vpack.c.b16 %v724, %v723
    %v739 = vpack.c.b16 %v726, %v725
    %v740 = vpack.c.b16 %v728, %v727
    %v741 = vpack.c.b16 %v730, %v729
    %v742 = vpack.c.b16 %v732, %v731
    %v743 = vpack.c.b16 %v734, %v733
    %v744 = vpack.c.b16 %v736, %v735
    %753 = vmatpush.bf16.msra.mxu0 %v744
    %754 = vmatpush.bf16.msra.mxu0 %v743
    %755 = vmatpush.bf16.msra.mxu0 %v742
    %756 = vmatpush.bf16.msra.mxu0 %v741
    %757 = vmatpush.bf16.msra.mxu0 %v740
    %758 = vmatpush.bf16.msra.mxu0 %v739
    %759 = vmatpush.bf16.msra.mxu0 %v738
    %760 = vmatpush.bf16.msra.mxu0 %v737
    %761 = vmatmul.bf16.gmra.mxu0 %v684
    %v762 = vpop.f32.mrf.mxu0
    %v763 = vadd.f32 0.0, %v762
    %v764 = vpop.f32.mrf.mxu0
    %765 = vdwg.mxu0
    %v766 = vadd.f32 %v688, %v763
    %v767 = vtanh.pop %v766
    %v768 = vpack.c.bf16 %v767, %v767
    %s769 = scalar_lea.vmem [#allocation3], 20
    %770 = vst [vmem:[%s769] sm:$0xf] %v768
    %s771 = scalar_lea.vmem [#allocation4], 48
    %v772 = vld [vmem:[%s771] sm:$0xff]
    %v773 = vld [vmem:[#allocation10] sm:$0xf]
    %v774 = vld [vmem:[#allocation10 + $0x4] sm:$0xf]
    %v775 = vld [vmem:[#allocation10 + $0x8] sm:$0xf]
    %v776 = vld [vmem:[#allocation10 + $0xc] sm:$0xf]
    %v777 = vld [vmem:[#allocation10 + $0x10] sm:$0xf]
    %v778 = vld [vmem:[#allocation10 + $0x14] sm:$0xf]
    %v779 = vld [vmem:[#allocation10 + $0x18] sm:$0xf]
    %v780 = vld [vmem:[#allocation10 + $0x1c] sm:$0xf]
    %v781 = vld [vmem:[#allocation10 + $0x20] sm:$0xf]
    %v782 = vld [vmem:[#allocation10 + $0x24] sm:$0xf]
    %v783 = vld [vmem:[#allocation10 + $0x28] sm:$0xf]
    %v784 = vld [vmem:[#allocation10 + $0x2c] sm:$0xf]
    %v785 = vld [vmem:[#allocation10 + $0x30] sm:$0xf]
    %v786 = vld [vmem:[#allocation10 + $0x34] sm:$0xf]
    %v787 = vld [vmem:[#allocation10 + $0x38] sm:$0xf]
    %v788 = vld [vmem:[#allocation10 + $0x3c] sm:$0xf]
    %v805 = vunpack.c.l.b16 %v773
    %v806 = vunpack.c.l.b16 %v774
    %v807 = vunpack.c.l.b16 %v775
    %v808 = vunpack.c.l.b16 %v776
    %v809 = vunpack.c.l.b16 %v777
    %v810 = vunpack.c.l.b16 %v778
    %v811 = vunpack.c.l.b16 %v779
    %v812 = vunpack.c.l.b16 %v780
    %v813 = vunpack.c.l.b16 %v781
    %v814 = vunpack.c.l.b16 %v782
    %v815 = vunpack.c.l.b16 %v783
    %v816 = vunpack.c.l.b16 %v784
    %v817 = vunpack.c.l.b16 %v785
    %v818 = vunpack.c.l.b16 %v786
    %v819 = vunpack.c.l.b16 %v787
    %v820 = vunpack.c.l.b16 %v788
    %v821 = vpack.c.b16 %v806, %v805
    %v822 = vpack.c.b16 %v808, %v807
    %v823 = vpack.c.b16 %v810, %v809
    %v824 = vpack.c.b16 %v812, %v811
    %v825 = vpack.c.b16 %v814, %v813
    %v826 = vpack.c.b16 %v816, %v815
    %v827 = vpack.c.b16 %v818, %v817
    %v828 = vpack.c.b16 %v820, %v819
    %837 = vmatpush.bf16.msra.mxu0 %v828
    %838 = vmatpush.bf16.msra.mxu0 %v827
    %839 = vmatpush.bf16.msra.mxu0 %v826
    %840 = vmatpush.bf16.msra.mxu0 %v825
    %841 = vmatpush.bf16.msra.mxu0 %v824
    %842 = vmatpush.bf16.msra.mxu0 %v823
    %843 = vmatpush.bf16.msra.mxu0 %v822
    %844 = vmatpush.bf16.msra.mxu0 %v821
    %845 = vmatmul.bf16.gmra.mxu0 %v768
    %v846 = vpop.f32.mrf.mxu0
    %v847 = vadd.f32 0.0, %v846
    %v848 = vpop.f32.mrf.mxu0
    %849 = vdwg.mxu0
    %v850 = vadd.f32 %v772, %v847
    %v851 = vtanh.pop %v850
    %v852 = vpack.c.bf16 %v851, %v851
    %s853 = scalar_lea.vmem [#allocation3], 24
    %854 = vst [vmem:[%s853] sm:$0xf] %v852
    %s855 = scalar_lea.vmem [#allocation4], 56
    %v856 = vld [vmem:[%s855] sm:$0xff]
    %v857 = vld [vmem:[#allocation10] sm:$0xf]
    %v858 = vld [vmem:[#allocation10 + $0x4] sm:$0xf]
    %v859 = vld [vmem:[#allocation10 + $0x8] sm:$0xf]
    %v860 = vld [vmem:[#allocation10 + $0xc] sm:$0xf]
    %v861 = vld [vmem:[#allocation10 + $0x10] sm:$0xf]
    %v862 = vld [vmem:[#allocation10 + $0x14] sm:$0xf]
    %v863 = vld [vmem:[#allocation10 + $0x18] sm:$0xf]
    %v864 = vld [vmem:[#allocation10 + $0x1c] sm:$0xf]
    %v865 = vld [vmem:[#allocation10 + $0x20] sm:$0xf]
    %v866 = vld [vmem:[#allocation10 + $0x24] sm:$0xf]
    %v867 = vld [vmem:[#allocation10 + $0x28] sm:$0xf]
    %v868 = vld [vmem:[#allocation10 + $0x2c] sm:$0xf]
    %v869 = vld [vmem:[#allocation10 + $0x30] sm:$0xf]
    %v870 = vld [vmem:[#allocation10 + $0x34] sm:$0xf]
    %v871 = vld [vmem:[#allocation10 + $0x38] sm:$0xf]
    %v872 = vld [vmem:[#allocation10 + $0x3c] sm:$0xf]
    %v889 = vunpack.c.l.b16 %v857
    %v890 = vunpack.c.l.b16 %v858
    %v891 = vunpack.c.l.b16 %v859
    %v892 = vunpack.c.l.b16 %v860
    %v893 = vunpack.c.l.b16 %v861
    %v894 = vunpack.c.l.b16 %v862
    %v895 = vunpack.c.l.b16 %v863
    %v896 = vunpack.c.l.b16 %v864
    %v897 = vunpack.c.l.b16 %v865
    %v898 = vunpack.c.l.b16 %v866
    %v899 = vunpack.c.l.b16 %v867
    %v900 = vunpack.c.l.b16 %v868
    %v901 = vunpack.c.l.b16 %v869
    %v902 = vunpack.c.l.b16 %v870
    %v903 = vunpack.c.l.b16 %v871
    %v904 = vunpack.c.l.b16 %v872
    %v905 = vpack.c.b16 %v890, %v889
    %v906 = vpack.c.b16 %v892, %v891
    %v907 = vpack.c.b16 %v894, %v893
    %v908 = vpack.c.b16 %v896, %v895
    %v909 = vpack.c.b16 %v898, %v897
    %v910 = vpack.c.b16 %v900, %v899
    %v911 = vpack.c.b16 %v902, %v901
    %v912 = vpack.c.b16 %v904, %v903
    %921 = vmatpush.bf16.msra.mxu0 %v912
    %922 = vmatpush.bf16.msra.mxu0 %v911
    %923 = vmatpush.bf16.msra.mxu0 %v910
    %924 = vmatpush.bf16.msra.mxu0 %v909
    %925 = vmatpush.bf16.msra.mxu0 %v908
    %926 = vmatpush.bf16.msra.mxu0 %v907
    %927 = vmatpush.bf16.msra.mxu0 %v906
    %928 = vmatpush.bf16.msra.mxu0 %v905
    %929 = vmatmul.bf16.gmra.mxu0 %v852
    %v930 = vpop.f32.mrf.mxu0
    %v931 = vadd.f32 0.0, %v930
    %v932 = vpop.f32.mrf.mxu0
    %933 = vdwg.mxu0
    %v934 = vadd.f32 %v856, %v931
    %v935 = vtanh.pop %v934
    %v936 = vpack.c.bf16 %v935, %v935
    %s937 = scalar_lea.vmem [#allocation3], 28
    %938 = vst [vmem:[%s937] sm:$0xf] %v936
    %939 = vst [vmem:[#allocation2] sm:$0xff] %v935
    %v940 = vld [vmem:[#allocation3] sm:$0xf]
    %v941 = vld [vmem:[#allocation3 + $0x4] sm:$0xf]
    %v942 = vld [vmem:[#allocation3 + $0x8] sm:$0xf]
    %v943 = vld [vmem:[#allocation3 + $0xc] sm:$0xf]
    %v944 = vld [vmem:[#allocation3 + $0x10] sm:$0xf]
    %v945 = vld [vmem:[#allocation3 + $0x14] sm:$0xf]
    %v946 = vld [vmem:[#allocation3 + $0x18] sm:$0xf]
    %v947 = vld [vmem:[#allocation3 + $0x1c] sm:$0xf]
    %v948 = vld [vmem:[#allocation11] sm:$0xf]
    %v949 = vld [vmem:[#allocation11 + $0x4] sm:$0xf]
    %v950 = vld [vmem:[#allocation11 + $0x8] sm:$0xf]
    %v951 = vld [vmem:[#allocation11 + $0xc] sm:$0xf]
    %v952 = vld [vmem:[#allocation11 + $0x10] sm:$0xf]
    %v953 = vld [vmem:[#allocation11 + $0x14] sm:$0xf]
    %v954 = vld [vmem:[#allocation11 + $0x18] sm:$0xf]
    %v955 = vld [vmem:[#allocation11 + $0x1c] sm:$0xf]
    %v956 = vld [vmem:[#allocation11 + $0x20] sm:$0xf]
    %v957 = vld [vmem:[#allocation11 + $0x24] sm:$0xf]
    %v958 = vld [vmem:[#allocation11 + $0x28] sm:$0xf]
    %v959 = vld [vmem:[#allocation11 + $0x2c] sm:$0xf]
    %v960 = vld [vmem:[#allocation11 + $0x30] sm:$0xf]
    %v961 = vld [vmem:[#allocation11 + $0x34] sm:$0xf]
    %v962 = vld [vmem:[#allocation11 + $0x38] sm:$0xf]
    %v963 = vld [vmem:[#allocation11 + $0x3c] sm:$0xf]
    %s964 = scalar_lea.vmem %s5, 1
    %v965 = vld [vmem:[%s964] sm:$0x1]
    %v967 = vperm.slane %v965, 0
    %v977 = vunpack.c.l.b16 %v940
    %v978 = vunpack.c.l.b16 %v941
    %v979 = vunpack.c.l.b16 %v942
    %v980 = vunpack.c.l.b16 %v943
    %v981 = vunpack.c.l.b16 %v944
    %v982 = vunpack.c.l.b16 %v945
    %v983 = vunpack.c.l.b16 %v946
    %v984 = vunpack.c.l.b16 %v947
    %v985 = vpack.c.b16 %v978, %v977
    %v986 = vpack.c.b16 %v980, %v979
    %v987 = vpack.c.b16 %v982, %v981
    %v988 = vpack.c.b16 %v984, %v983
    %v1009 = vunpack.c.l.b16 %v948
    %v1010 = vunpack.c.l.b16 %v949
    %v1011 = vunpack.c.l.b16 %v950
    %v1012 = vunpack.c.l.b16 %v951
    %v1013 = vunpack.c.l.b16 %v952
    %v1014 = vunpack.c.l.b16 %v953
    %v1015 = vunpack.c.l.b16 %v954
    %v1016 = vunpack.c.l.b16 %v955
    %v1017 = vunpack.c.l.b16 %v956
    %v1018 = vunpack.c.l.b16 %v957
    %v1019 = vunpack.c.l.b16 %v958
    %v1020 = vunpack.c.l.b16 %v959
    %v1021 = vunpack.c.l.b16 %v960
    %v1022 = vunpack.c.l.b16 %v961
    %v1023 = vunpack.c.l.b16 %v962
    %v1024 = vunpack.c.l.b16 %v963
    %v1025 = vpack.c.b16 %v1010, %v1009
    %v1026 = vpack.c.b16 %v1012, %v1011
    %v1027 = vpack.c.b16 %v1014, %v1013
    %v1028 = vpack.c.b16 %v1016, %v1015
    %v1029 = vpack.c.b16 %v1018, %v1017
    %v1030 = vpack.c.b16 %v1020, %v1019
    %v1031 = vpack.c.b16 %v1022, %v1021
    %v1032 = vpack.c.b16 %v1024, %v1023
    %1041 = vmatpush.bf16.msra.mxu0 %v1032
    %1042 = vmatpush.bf16.msra.mxu0 %v1031
    %1043 = vmatpush.bf16.msra.mxu0 %v1030
    %1044 = vmatpush.bf16.msra.mxu0 %v1029
    %1045 = vmatpush.bf16.msra.mxu0 %v1028
    %1046 = vmatpush.bf16.msra.mxu0 %v1027
    %1047 = vmatpush.bf16.msra.mxu0 %v1026
    %1048 = vmatpush.bf16.msra.mxu0 %v1025
    %1049 = vmatmul.bf16.gmra.mxu0 %v985
    %v1050 = vpop.f32.mrf.mxu0
    %v1051 = vadd.f32 %v967, %v1050
    %v1052 = vpop.f32.mrf.mxu0
    %v1053 = vadd.f32 %v967, %v1052
    %1054 = vmatmul.bf16.gmra.mxu0 %v986
    %v1055 = vpop.f32.mrf.mxu0
    %v1056 = vadd.f32 %v967, %v1055
    %v1057 = vpop.f32.mrf.mxu0
    %v1058 = vadd.f32 %v967, %v1057
    %1059 = vmatmul.bf16.gmra.mxu0 %v987
    %v1060 = vpop.f32.mrf.mxu0
    %v1061 = vadd.f32 %v967, %v1060
    %v1062 = vpop.f32.mrf.mxu0
    %v1063 = vadd.f32 %v967, %v1062
    %1064 = vmatmul.bf16.gmra.mxu0 %v988
    %v1065 = vpop.f32.mrf.mxu0
    %v1066 = vadd.f32 %v967, %v1065
    %v1067 = vpop.f32.mrf.mxu0
    %v1068 = vadd.f32 %v967, %v1067
    %1069 = vdwg.mxu0
    %1070 = vst [vmem:[#allocation4] sm:$0xff] %v1051
    %1071 = vst [vmem:[#allocation4 + $0x8] sm:$0xff] %v1053
    %1072 = vst [vmem:[#allocation4 + $0x10] sm:$0xff] %v1056
    %1073 = vst [vmem:[#allocation4 + $0x18] sm:$0xff] %v1058
    %1074 = vst [vmem:[#allocation4 + $0x20] sm:$0xff] %v1061
    %1075 = vst [vmem:[#allocation4 + $0x28] sm:$0xff] %v1063
    %1076 = vst [vmem:[#allocation4 + $0x30] sm:$0xff] %v1066
    %1077 = vst [vmem:[#allocation4 + $0x38] sm:$0xff] %v1068
    %s1078 = scalar_lea.vmem [#allocation2], 8
    %v1079 = vld [vmem:[%s1078] sm:$0xff]
    %v1080 = vld [vmem:[#allocation4] sm:$0xff]
    %v1081 = vpack.c.bf16 %v1079, %v1079
    %v1082 = vld [vmem:[#allocation13] sm:$0xf]
    %v1083 = vld [vmem:[#allocation13 + $0x4] sm:$0xf]
    %v1084 = vld [vmem:[#allocation13 + $0x8] sm:$0xf]
    %v1085 = vld [vmem:[#allocation13 + $0xc] sm:$0xf]
    %v1086 = vld [vmem:[#allocation13 + $0x10] sm:$0xf]
    %v1087 = vld [vmem:[#allocation13 + $0x14] sm:$0xf]
    %v1088 = vld [vmem:[#allocation13 + $0x18] sm:$0xf]
    %v1089 = vld [vmem:[#allocation13 + $0x1c] sm:$0xf]
    %v1090 = vld [vmem:[#allocation13 + $0x20] sm:$0xf]
    %v1091 = vld [vmem:[#allocation13 + $0x24] sm:$0xf]
    %v1092 = vld [vmem:[#allocation13 + $0x28] sm:$0xf]
    %v1093 = vld [vmem:[#allocation13 + $0x2c] sm:$0xf]
    %v1094 = vld [vmem:[#allocation13 + $0x30] sm:$0xf]
    %v1095 = vld [vmem:[#allocation13 + $0x34] sm:$0xf]
    %v1096 = vld [vmem:[#allocation13 + $0x38] sm:$0xf]
    %v1097 = vld [vmem:[#allocation13 + $0x3c] sm:$0xf]
    %v1114 = vunpack.c.l.b16 %v1082
    %v1115 = vunpack.c.l.b16 %v1083
    %v1116 = vunpack.c.l.b16 %v1084
    %v1117 = vunpack.c.l.b16 %v1085
    %v1118 = vunpack.c.l.b16 %v1086
    %v1119 = vunpack.c.l.b16 %v1087
    %v1120 = vunpack.c.l.b16 %v1088
    %v1121 = vunpack.c.l.b16 %v1089
    %v1122 = vunpack.c.l.b16 %v1090
    %v1123 = vunpack.c.l.b16 %v1091
    %v1124 = vunpack.c.l.b16 %v1092
    %v1125 = vunpack.c.l.b16 %v1093
    %v1126 = vunpack.c.l.b16 %v1094
    %v1127 = vunpack.c.l.b16 %v1095
    %v1128 = vunpack.c.l.b16 %v1096
    %v1129 = vunpack.c.l.b16 %v1097
    %v1130 = vpack.c.b16 %v1115, %v1114
    %v1131 = vpack.c.b16 %v1117, %v1116
    %v1132 = vpack.c.b16 %v1119, %v1118
    %v1133 = vpack.c.b16 %v1121, %v1120
    %v1134 = vpack.c.b16 %v1123, %v1122
    %v1135 = vpack.c.b16 %v1125, %v1124
    %v1136 = vpack.c.b16 %v1127, %v1126
    %v1137 = vpack.c.b16 %v1129, %v1128
    %1146 = vmatpush.bf16.msra.mxu0 %v1137
    %1147 = vmatpush.bf16.msra.mxu0 %v1136
    %1148 = vmatpush.bf16.msra.mxu0 %v1135
    %1149 = vmatpush.bf16.msra.mxu0 %v1134
    %1150 = vmatpush.bf16.msra.mxu0 %v1133
    %1151 = vmatpush.bf16.msra.mxu0 %v1132
    %1152 = vmatpush.bf16.msra.mxu0 %v1131
    %1153 = vmatpush.bf16.msra.mxu0 %v1130
    %1154 = vmatmul.bf16.gmra.mxu0 %v1081
    %v1155 = vpop.f32.mrf.mxu0
    %v1156 = vadd.f32 0.0, %v1155
    %v1157 = vpop.f32.mrf.mxu0
    %1158 = vdwg.mxu0
    %v1159 = vadd.f32 %v1080, %v1156
    %v1160 = vtanh.pop %v1159
    %v1161 = vld [vmem:[%s351] sm:$0xff]
    %v1162 = vpack.c.bf16 %v1160, %v1160
    %1163 = vmatpush.bf16.msra.mxu0 %v1137
    %1164 = vmatpush.bf16.msra.mxu0 %v1136
    %1165 = vmatpush.bf16.msra.mxu0 %v1135
    %1166 = vmatpush.bf16.msra.mxu0 %v1134
    %1167 = vmatpush.bf16.msra.mxu0 %v1133
    %1168 = vmatpush.bf16.msra.mxu0 %v1132
    %1169 = vmatpush.bf16.msra.mxu0 %v1131
    %1170 = vmatpush.bf16.msra.mxu0 %v1130
    %1171 = vmatmul.bf16.gmra.mxu0 %v1162
    %v1172 = vpop.f32.mrf.mxu0
    %v1173 = vadd.f32 0.0, %v1172
    %v1174 = vpop.f32.mrf.mxu0
    %1175 = vdwg.mxu0
    %v1176 = vadd.f32 %v1161, %v1173
    %v1177 = vtanh.pop %v1176
    %v1178 = vld [vmem:[%s435] sm:$0xff]
    %v1179 = vpack.c.bf16 %v1177, %v1177
    %1180 = vmatpush.bf16.msra.mxu0 %v1137
    %1181 = vmatpush.bf16.msra.mxu0 %v1136
    %1182 = vmatpush.bf16.msra.mxu0 %v1135
    %1183 = vmatpush.bf16.msra.mxu0 %v1134
    %1184 = vmatpush.bf16.msra.mxu0 %v1133
    %1185 = vmatpush.bf16.msra.mxu0 %v1132
    %1186 = vmatpush.bf16.msra.mxu0 %v1131
    %1187 = vmatpush.bf16.msra.mxu0 %v1130
    %1188 = vmatmul.bf16.gmra.mxu0 %v1179
    %v1189 = vpop.f32.mrf.mxu0
    %v1190 = vadd.f32 0.0, %v1189
    %v1191 = vpop.f32.mrf.mxu0
    %1192 = vdwg.mxu0
    %v1193 = vadd.f32 %v1178, %v1190
    %v1194 = vtanh.pop %v1193
    %v1195 = vld [vmem:[%s519] sm:$0xff]
    %v1196 = vpack.c.bf16 %v1194, %v1194
    %1197 = vmatpush.bf16.msra.mxu0 %v1137
    %1198 = vmatpush.bf16.msra.mxu0 %v1136
    %1199 = vmatpush.bf16.msra.mxu0 %v1135
    %1200 = vmatpush.bf16.msra.mxu0 %v1134
    %1201 = vmatpush.bf16.msra.mxu0 %v1133
    %1202 = vmatpush.bf16.msra.mxu0 %v1132
    %1203 = vmatpush.bf16.msra.mxu0 %v1131
    %1204 = vmatpush.bf16.msra.mxu0 %v1130
    %1205 = vmatmul.bf16.gmra.mxu0 %v1196
    %v1206 = vpop.f32.mrf.mxu0
    %v1207 = vadd.f32 0.0, %v1206
    %v1208 = vpop.f32.mrf.mxu0
    %1209 = vdwg.mxu0
    %v1210 = vadd.f32 %v1195, %v1207
    %v1211 = vtanh.pop %v1210
    %v1212 = vld [vmem:[%s603] sm:$0xff]
    %v1213 = vpack.c.bf16 %v1211, %v1211
    %1214 = vmatpush.bf16.msra.mxu0 %v1137
    %1215 = vmatpush.bf16.msra.mxu0 %v1136
    %1216 = vmatpush.bf16.msra.mxu0 %v1135
    %1217 = vmatpush.bf16.msra.mxu0 %v1134
    %1218 = vmatpush.bf16.msra.mxu0 %v1133
    %1219 = vmatpush.bf16.msra.mxu0 %v1132
    %1220 = vmatpush.bf16.msra.mxu0 %v1131
    %1221 = vmatpush.bf16.msra.mxu0 %v1130
    %1222 = vmatmul.bf16.gmra.mxu0 %v1213
    %v1223 = vpop.f32.mrf.mxu0
    %v1224 = vadd.f32 0.0, %v1223
    %v1225 = vpop.f32.mrf.mxu0
    %1226 = vdwg.mxu0
    %v1227 = vadd.f32 %v1212, %v1224
    %v1228 = vtanh.pop %v1227
    %v1229 = vld [vmem:[%s687] sm:$0xff]
    %v1230 = vpack.c.bf16 %v1228, %v1228
    %1231 = vmatpush.bf16.msra.mxu0 %v1137
    %1232 = vmatpush.bf16.msra.mxu0 %v1136
    %1233 = vmatpush.bf16.msra.mxu0 %v1135
    %1234 = vmatpush.bf16.msra.mxu0 %v1134
    %1235 = vmatpush.bf16.msra.mxu0 %v1133
    %1236 = vmatpush.bf16.msra.mxu0 %v1132
    %1237 = vmatpush.bf16.msra.mxu0 %v1131
    %1238 = vmatpush.bf16.msra.mxu0 %v1130
    %1239 = vmatmul.bf16.gmra.mxu0 %v1230
    %v1240 = vpop.f32.mrf.mxu0
    %v1241 = vadd.f32 0.0, %v1240
    %v1242 = vpop.f32.mrf.mxu0
    %1243 = vdwg.mxu0
    %v1244 = vadd.f32 %v1229, %v1241
    %v1245 = vtanh.pop %v1244
    %v1246 = vld [vmem:[%s771] sm:$0xff]
    %v1247 = vpack.c.bf16 %v1245, %v1245
    %1248 = vmatpush.bf16.msra.mxu0 %v1137
    %1249 = vmatpush.bf16.msra.mxu0 %v1136
    %1250 = vmatpush.bf16.msra.mxu0 %v1135
    %1251 = vmatpush.bf16.msra.mxu0 %v1134
    %1252 = vmatpush.bf16.msra.mxu0 %v1133
    %1253 = vmatpush.bf16.msra.mxu0 %v1132
    %1254 = vmatpush.bf16.msra.mxu0 %v1131
    %1255 = vmatpush.bf16.msra.mxu0 %v1130
    %1256 = vmatmul.bf16.gmra.mxu0 %v1247
    %v1257 = vpop.f32.mrf.mxu0
    %v1258 = vadd.f32 0.0, %v1257
    %v1259 = vpop.f32.mrf.mxu0
    %1260 = vdwg.mxu0
    %v1261 = vadd.f32 %v1246, %v1258
    %v1262 = vtanh.pop %v1261
    %v1263 = vld [vmem:[%s855] sm:$0xff]
    %v1264 = vpack.c.bf16 %v1262, %v1262
    %1265 = vmatpush.bf16.msra.mxu0 %v1137
    %1266 = vmatpush.bf16.msra.mxu0 %v1136
    %1267 = vmatpush.bf16.msra.mxu0 %v1135
    %1268 = vmatpush.bf16.msra.mxu0 %v1134
    %1269 = vmatpush.bf16.msra.mxu0 %v1133
    %1270 = vmatpush.bf16.msra.mxu0 %v1132
    %1271 = vmatpush.bf16.msra.mxu0 %v1131
    %1272 = vmatpush.bf16.msra.mxu0 %v1130
    %1273 = vmatmul.bf16.gmra.mxu0 %v1264
    %v1274 = vpop.f32.mrf.mxu0
    %v1275 = vadd.f32 0.0, %v1274
    %v1276 = vpop.f32.mrf.mxu0
    %1277 = vdwg.mxu0
    %v1278 = vadd.f32 %v1263, %v1275
    %v1279 = vtanh.pop %v1278
    %1280 = vst [vmem:[%s1078] sm:$0xff] %v1279
    // Predicated region
    $region62: #{tpu_custom_call.1} parent=1 // pred_check
      %p1281 = pneg %p124
    $region63: #{tpu_custom_call.1} parent=1 // pred_check_branch
      %1283 = sbr.rel (%p1281) target = $region65
    $region64: #{tpu_custom_call.1} parent=1 // pred_region
      %v1284 = vpack.c.bf16 %v1279, %v1279
      %v1285 = vld [vmem:[#allocation14] sm:$0xf]
      %v1286 = vld [vmem:[#allocation14 + $0x4] sm:$0xf]
      %v1287 = vld [vmem:[#allocation14 + $0x8] sm:$0xf]
      %v1288 = vld [vmem:[#allocation14 + $0xc] sm:$0xf]
      %v1289 = vld [vmem:[#allocation14 + $0x10] sm:$0xf]
      %v1290 = vld [vmem:[#allocation14 + $0x14] sm:$0xf]
      %v1291 = vld [vmem:[#allocation14 + $0x18] sm:$0xf]
      %v1292 = vld [vmem:[#allocation14 + $0x1c] sm:$0xf]
      %v1293 = vld [vmem:[#allocation14 + $0x20] sm:$0xf]
      %v1294 = vld [vmem:[#allocation14 + $0x24] sm:$0xf]
      %v1295 = vld [vmem:[#allocation14 + $0x28] sm:$0xf]
      %v1296 = vld [vmem:[#allocation14 + $0x2c] sm:$0xf]
      %v1297 = vld [vmem:[#allocation14 + $0x30] sm:$0xf]
      %v1298 = vld [vmem:[#allocation14 + $0x34] sm:$0xf]
      %v1299 = vld [vmem:[#allocation14 + $0x38] sm:$0xf]
      %v1300 = vld [vmem:[#allocation14 + $0x3c] sm:$0xf]
      %v1301 = vld [vmem:[%s7] sm:$0x1]
      %v1303 = vperm.slane %v1301, 0
      %v1321 = vunpack.c.l.b16 %v1285
      %v1322 = vunpack.c.l.b16 %v1286
      %v1323 = vunpack.c.l.b16 %v1287
      %v1324 = vunpack.c.l.b16 %v1288
      %v1325 = vunpack.c.l.b16 %v1289
      %v1326 = vunpack.c.l.b16 %v1290
      %v1327 = vunpack.c.l.b16 %v1291
      %v1328 = vunpack.c.l.b16 %v1292
      %v1329 = vunpack.c.l.b16 %v1293
      %v1330 = vunpack.c.l.b16 %v1294
      %v1331 = vunpack.c.l.b16 %v1295
      %v1332 = vunpack.c.l.b16 %v1296
      %v1333 = vunpack.c.l.b16 %v1297
      %v1334 = vunpack.c.l.b16 %v1298
      %v1335 = vunpack.c.l.b16 %v1299
      %v1336 = vunpack.c.l.b16 %v1300
      %v1337 = vpack.c.b16 %v1322, %v1321
      %v1338 = vpack.c.b16 %v1324, %v1323
      %v1339 = vpack.c.b16 %v1326, %v1325
      %v1340 = vpack.c.b16 %v1328, %v1327
      %v1341 = vpack.c.b16 %v1330, %v1329
      %v1342 = vpack.c.b16 %v1332, %v1331
      %v1343 = vpack.c.b16 %v1334, %v1333
      %v1344 = vpack.c.b16 %v1336, %v1335
      %1353 = vmatpush.bf16.msra.mxu0 %v1344
      %1354 = vmatpush.bf16.msra.mxu0 %v1343
      %1355 = vmatpush.bf16.msra.mxu0 %v1342
      %1356 = vmatpush.bf16.msra.mxu0 %v1341
      %1357 = vmatpush.bf16.msra.mxu0 %v1340
      %1358 = vmatpush.bf16.msra.mxu0 %v1339
      %1359 = vmatpush.bf16.msra.mxu0 %v1338
      %1360 = vmatpush.bf16.msra.mxu0 %v1337
      %1361 = vmatmul.bf16.gmra.mxu0 %v1284
      %v1362 = vpop.f32.mrf.mxu0
      %v1363 = vadd.f32 %v1303, %v1362
      %v1364 = vpop.f32.mrf.mxu0
      %1365 = vdwg.mxu0
      %1366 = vst [vmem:[#allocation16] sm:$0xff] %v1363
    $region65: #{tpu_custom_call.1} parent=1 // pred_fallthru
      _
    // Predicated region
    $region66: #{tpu_custom_call.1} parent=1 // pred_check
      _
    $region67: #{tpu_custom_call.1} parent=1 // pred_check_branch
      %1368 = sbr.rel (0) target = $region69
    $region68: #{tpu_custom_call.1} parent=1 // pred_region
      %1370 = vsyncadd [#allocation7], 0
      %s1372 = sshll.u32 [#allocation16], 4
      %s1373 = int_to_ptr.vmem [resolvable:$true] %s1372
      %s1374 = sshll.u32 %s8, 4
      %s1375 = int_to_ptr.hbm [resolvable:$true] %s1374
      %1377 = dma.vmem_to_hbm [thread:$0]  %s1373, 128, %s1375, [#allocation7]
    $region69: #{tpu_custom_call.1} parent=1 // pred_fallthru
      _
    // Predicated region
    $region70: #{tpu_custom_call.1} parent=1 // pred_check
      _
    $region71: #{tpu_custom_call.1} parent=1 // pred_check_branch
      %1379 = sbr.rel (0) target = $region73
    $region72: #{tpu_custom_call.1} parent=1 // pred_region
      %1381 = dma.done [#allocation7], 128
    $region73: #{tpu_custom_call.1} parent=1 // pred_fallthru
      _
    %1382 = vsyncpa [#allocation6], 1
    %1383 = vsyncpa [#allocation9], 1
    %1384 = vsyncpa [#allocation12], 1
    %1385 = vsyncpa [#allocation15], 1
    %1386 = vsyncpa [#allocation7], 1

</llo_original>
